<compile_context>
chip_gen: v6e
topology: v6e:2x2x1
jax: 0.10.0
libtpu: 0.0.40
codegen_flags: <defaults>
</compile_context>

<pallas_src>
import functools

import numpy as np
import jax
import jax.numpy as jnp
from jax.experimental import pallas as pl
from jax.experimental.pallas import tpu as pltpu

ACT_CONST = 1.7159   # Multiply(activation_constant) after every Tanh
BN_EPS = 1e-5

# Classic LeNet-5 C3 connection table (which S2 maps feed each C3 map).
C3_TABLE = [
    (0, 1, 2), (1, 2, 3), (2, 3, 4), (3, 4, 5), (0, 4, 5), (0, 1, 5),
    (0, 1, 2, 3), (1, 2, 3, 4), (2, 3, 4, 5), (0, 3, 4, 5), (0, 1, 4, 5),
    (0, 1, 2, 5), (0, 1, 3, 4), (1, 2, 4, 5), (0, 2, 3, 5),
    (0, 1, 2, 3, 4, 5),
]

_WEIGHT_ORDER = ("c1w", "c1b", "pool1_rows", "pool1_cols",
                 "c3w", "c3b", "pool2_rows", "pool2_cols",
                 "c5w", "c5b", "f6w", "f6b", "f7w", "f7sq")
_F32_KEYS = {"c1b", "c3b", "c5b", "f6b", "f7sq"}


# --------------------------------------------------------------------------
# The fused Pallas kernel (one image per grid step; everything in VMEM).
# --------------------------------------------------------------------------
def _lenet5_kernel(x_ref, c1w_ref, c1b_ref, pr1_ref, pc1_ref,
                   c3w_ref, c3b_ref, pr2_ref, pc2_ref,
                   c5w_ref, c5b_ref, f6w_ref, f6b_ref, f7w_ref, f7sq_ref,
                   o_ref, s2_ref, s4_ref, *, act_const):
    f32 = jnp.float32
    bf16 = jnp.bfloat16

    # ---- C1: 5x5 valid conv (BN folded) + tanh * k  ->  (28, 6*28) --------
    acc = jnp.zeros((28, c1w_ref.shape[2]), f32)
    for dy in range(5):
        xs = x_ref[0, dy:dy + 28, :].astype(bf16)            # (28, Cin*32)
        acc = acc + jnp.dot(xs, c1w_ref[dy], preferred_element_type=f32)
    h = act_const * jnp.tanh(acc + c1b_ref[...])             # f32 (28, 168)

    # ---- S2: 2x2 average pool (its affine is folded into C3) --------------
    hb = h.astype(bf16)
    t = jnp.dot(pr1_ref[...], hb, preferred_element_type=f32)        # (14, 168)
    s2 = jnp.dot(t.astype(bf16), pc1_ref[...], preferred_element_type=f32)
    s2_ref[...] = s2                                          # (14, 6*14) f32

    # ---- C3: partially-connected 5x5 conv (S2 + BN folded) + tanh * k -----
    acc = jnp.zeros((10, c3w_ref.shape[2]), f32)
    for dy in range(5):
        xs = s2_ref[dy:dy + 10, :].astype(bf16)               # (10, 84)
        acc = acc + jnp.dot(xs, c3w_ref[dy], preferred_element_type=f32)
    h = act_const * jnp.tanh(acc + c3b_ref[...])              # (10, 16*10)

    # ---- S4: 2x2 average pool (its affine is folded into C5) --------------
    hb = h.astype(bf16)
    t = jnp.dot(pr2_ref[...], hb, preferred_element_type=f32)         # (5, 160)
    s4 = jnp.dot(t.astype(bf16), pc2_ref[...], preferred_element_type=f32)
    s4_ref[...] = s4                                          # (5, 16*5) f32

    # ---- C5: 5x5 conv on 5x5 -> 1x1 (S4 + BN folded) + tanh * k -----------
    acc = jnp.zeros((1, c5w_ref.shape[2]), f32)
    for dy in range(5):
        xs = s4_ref[dy:dy + 1, :].astype(bf16)                # (1, 80)
        acc = acc + jnp.dot(xs, c5w_ref[dy], preferred_element_type=f32)
    h5 = act_const * jnp.tanh(acc + c5b_ref[...])             # (1, 120)

    # ---- F6: Linear(120, 84) + tanh * k ------------------------------------
    h6 = act_const * jnp.tanh(
        jnp.dot(h5.astype(bf16), f6w_ref[...], preferred_element_type=f32)
        + f6b_ref[...])                                       # (1, 84)

    # ---- F7: Euclidean RBF output layer ------------------------------------
    #   out[i] = ||h6 - w_i||^2 = |h6|^2 + |w_i|^2 - 2 h6.w_i
    cross = jnp.dot(h6.astype(bf16), f7w_ref[...], preferred_element_type=f32)
    hsq = jnp.sum(h6 * h6, axis=-1, keepdims=True)            # (1, 1)
    res = hsq + f7sq_ref[...] - 2.0 * cross                   # (1, 128)

    # Dense (8, 128) store; wrapper slices row 0, cols [:num_classes].
    o_ref[0] = jnp.broadcast_to(res, o_ref.shape[1:]).astype(o_ref.dtype)


# --------------------------------------------------------------------------
# pallas_call wrapper
# --------------------------------------------------------------------------
def _full_spec(arr):
    if arr.ndim == 2:
        return pl.BlockSpec(arr.shape, lambda i: (0, 0))
    return pl.BlockSpec(arr.shape, lambda i: (0, 0, 0))


def lenet5_forward(params, x_nchw, num_classes=10):
    n, cin, h, w = x_nchw.shape
    x = x_nchw.astype(jnp.float32)
    if (h, w) != (32, 32):
        x = jax.image.resize(x, (n, cin, 32, 32), "linear")
    # NCHW -> (N, 32, Cin*32): row y, lanes channel-major (col = c*32 + x).
    x = jnp.transpose(x, (0, 2, 1, 3)).reshape(n, 32, cin * 32)

    weights = [params[k] for k in _WEIGHT_ORDER]
    kernel = functools.partial(_lenet5_kernel, act_const=ACT_CONST)

    cin32 = cin * 32
    flops_per_img = 2 * (
        5 * 28 * cin32 * 168 +                 # C1
        14 * 28 * 168 + 14 * 168 * 84 +        # S2 pool matmuls
        5 * 10 * 84 * 160 +                    # C3
        5 * 10 * 160 + 5 * 160 * 80 +          # S4 pool matmuls
        5 * 1 * 80 * 120 +                     # C5
        120 * 84 + 84 * 128)                   # F6, F7
    trans_per_img = 28 * 168 + 10 * 160 + 120 + 84
    w_bytes = sum(int(np.prod(v.shape)) * v.dtype.itemsize for v in weights)
    cost = pl.CostEstimate(
        flops=int(n * flops_per_img),
        transcendentals=int(n * trans_per_img),
        bytes_accessed=int(n * 32 * cin32 * 4 + w_bytes + n * 8 * 128 * 4))

    out = pl.pallas_call(
        kernel,
        out_shape=jax.ShapeDtypeStruct((n, 8, 128), jnp.float32),
        grid=(n,),
        in_specs=[pl.BlockSpec((1, 32, cin * 32), lambda i: (i, 0, 0))]
                 + [_full_spec(v) for v in weights],
        out_specs=pl.BlockSpec((1, 8, 128), lambda i: (i, 0, 0)),
        scratch_shapes=[pltpu.VMEM((14, 84), jnp.float32),   # S2 activations
                        pltpu.VMEM((5, 80), jnp.float32)],   # S4 activations
        compiler_params=pltpu.CompilerParams(
            dimension_semantics=("parallel",)),
        cost_estimate=cost,
    )(x, *weights)
    return out[:, 0, :num_classes]


# --------------------------------------------------------------------------
# Raw parameters (mirror PyTorch default inits) - host-side numpy.
# --------------------------------------------------------------------------
def build_raw_params(seed=0, num_channels=1, num_classes=10):
    rng = np.random.default_rng(seed)

    def u(shape, fan_in):
        b = 1.0 / np.sqrt(fan_in)
        return rng.uniform(-b, b, size=shape).astype(np.float32)

    def bn(c):
        return dict(gamma=np.ones(c, np.float32), beta=np.zeros(c, np.float32),
                    mean=np.zeros(c, np.float32), var=np.ones(c, np.float32))

    p = {}
    p["w1"] = u((6, num_channels, 5, 5), num_channels * 25)
    p["b1"] = u((6,), num_channels * 25)
    p["bn1"] = bn(6)
    p["s2_coef"] = u((6,), 4)
    p["s2_bias"] = u((6,), 4)
    w3 = u((16, 6, 5, 5), 6 * 25)
    mask = np.zeros((16, 6), np.float32)
    for o, row in enumerate(C3_TABLE):
        for c in row:
            mask[o, c] = 1.0
    p["w3"] = w3 * mask[:, :, None, None]          # connection-table partial conv
    p["b3"] = u((16,), 6 * 25)
    p["bn3"] = bn(16)
    p["s4_coef"] = u((16,), 4)
    p["s4_bias"] = u((16,), 4)
    p["w5"] = u((120, 16, 5, 5), 16 * 25)
    p["b5"] = u((120,), 16 * 25)
    p["bn5"] = bn(120)
    p["w6"] = u((84, 120), 120)
    p["b6"] = u((84,), 120)
    # TODO(synk): classic F7 uses fixed +/-1 digit bitmaps; random +/-1 here.
    p["w7"] = np.where(rng.random((num_classes, 84)) < 0.5, -1.0, 1.0
                       ).astype(np.float32)
    return p


# --------------------------------------------------------------------------
# One-time folding / banded-matrix layout (host-side numpy).
# --------------------------------------------------------------------------
def _fold_bn(w, b, bnp):
    s = bnp["gamma"] / np.sqrt(bnp["var"] + BN_EPS)
    return w * s[:, None, None, None], s * (b - bnp["mean"]) + bnp["beta"]


def _fold_s(w, b, coef, sbias):
    # conv(coef * pooled + sbias) = conv_{w*coef}(pooled) + sum(w)*sbias
    b2 = b + np.einsum("ocij,c->o", w, sbias)
    w2 = w * coef[None, :, None, None]
    return w2, b2


def _band(w_dy, in_w, out_w):
    """w_dy: (Cout, Cin, 5) taps of one kernel row -> (Cin*in_w, Cout*out_w)."""
    cout, cin, k = w_dy.shape
    m = np.zeros((cin * in_w, cout * out_w), np.float32)
    for o in range(cout):
        for c in range(cin):
            for xo in range(out_w):
                m[c * in_w + xo:c * in_w + xo + k, o * out_w + xo] = w_dy[o, c]
    return m


def _pool_rows(h_in):
    m = np.zeros((h_in // 2, h_in), np.float32)
    for y in range(h_in // 2):
        m[y, 2 * y] = 0.5
        m[y, 2 * y + 1] = 0.5
    return m


def _pool_cols(ch, w_in):
    w_out = w_in // 2
    m = np.zeros((ch * w_in, ch * w_out), np.float32)
    for c in range(ch):
        for x in range(w_out):
            m[c * w_in + 2 * x, c * w_out + x] = 0.5
            m[c * w_in + 2 * x + 1, c * w_out + x] = 0.5
    return m


def prepare_params(raw, num_classes=10):
    assert num_classes <= 128
    # C1 + BN1
    w1, b1 = _fold_bn(raw["w1"], raw["b1"], raw["bn1"])
    c1w = np.stack([_band(w1[:, :, dy, :], 32, 28) for dy in range(5)])
    c1b = np.repeat(b1, 28)[None, :]                              # (1, 168)
    # C3: fold S2 affine, then BN3
    w3, b3 = _fold_s(raw["w3"], raw["b3"], raw["s2_coef"], raw["s2_bias"])
    w3, b3 = _fold_bn(w3, b3, raw["bn3"])
    c3w = np.stack([_band(w3[:, :, dy, :], 14, 10) for dy in range(5)])
    c3b = np.repeat(b3, 10)[None, :]                              # (1, 160)
    # C5: fold S4 affine, then BN5
    w5, b5 = _fold_s(raw["w5"], raw["b5"], raw["s4_coef"], raw["s4_bias"])
    w5, b5 = _fold_bn(w5, b5, raw["bn5"])
    c5w = np.stack([np.transpose(w5[:, :, dy, :], (1, 2, 0)).reshape(16 * 5, 120)
                    for dy in range(5)])                          # (5, 80, 120)
    c5b = b5[None, :]
    # F6 linear
    f6w = raw["w6"].T.copy()                                      # (120, 84)
    f6b = raw["b6"][None, :]
    # F7 RBF prototypes, classes padded to 128 lanes (pad sliced off later)
    w7 = raw["w7"]
    f7w = np.zeros((84, 128), np.float32)
    f7w[:, :num_classes] = w7.T
    f7sq = np.zeros((1, 128), np.float32)
    f7sq[0, :num_classes] = (w7 * w7).sum(axis=1)

    host = dict(c1w=c1w, c1b=c1b,
                pool1_rows=_pool_rows(28), pool1_cols=_pool_cols(6, 28),
                c3w=c3w, c3b=c3b,
                pool2_rows=_pool_rows(10), pool2_cols=_pool_cols(16, 10),
                c5w=c5w, c5b=c5b, f6w=f6w, f6b=f6b, f7w=f7w, f7sq=f7sq)
    # MXU operands in bf16; biases / |w|^2 stay f32.
    return {k: jnp.asarray(v, jnp.float32 if k in _F32_KEYS else jnp.bfloat16)
            for k, v in host.items()}


# --------------------------------------------------------------------------
if __name__ == "__main__":
    NUM_CLASSES = 10
    NUM_CHANNELS = 1

    raw = build_raw_params(seed=0, num_channels=NUM_CHANNELS,
                           num_classes=NUM_CLASSES)
    params = prepare_params(raw, num_classes=NUM_CLASSES)

    # MNIST-like input already at 32x32 (Resize is then the identity).
    x = jax.random.normal(jax.random.PRNGKey(0),
                          (2, NUM_CHANNELS, 32, 32), jnp.float32)

    fwd = jax.jit(functools.partial(lenet5_forward, num_classes=NUM_CLASSES))
    logits = fwd(params, x)
    jax.block_until_ready(logits)
    assert logits.shape == (2, NUM_CLASSES)
    assert bool(jnp.all(jnp.isfinite(logits)))
    print("KERNEL_OK")
</pallas_src>

<mosaic_0001>
module attributes {stable_mosaic.version = 11 : i64} {
  func.func @_lenet5_kernel(%arg0: i32, %arg1: memref<1x32x32xf32, #tpu.memory_space<vmem>>, %arg2: memref<5x32x168xbf16, #tpu.memory_space<vmem>>, %arg3: memref<1x168xf32, #tpu.memory_space<vmem>>, %arg4: memref<14x28xbf16, #tpu.memory_space<vmem>>, %arg5: memref<168x84xbf16, #tpu.memory_space<vmem>>, %arg6: memref<5x84x160xbf16, #tpu.memory_space<vmem>>, %arg7: memref<1x160xf32, #tpu.memory_space<vmem>>, %arg8: memref<5x10xbf16, #tpu.memory_space<vmem>>, %arg9: memref<160x80xbf16, #tpu.memory_space<vmem>>, %arg10: memref<5x80x120xbf16, #tpu.memory_space<vmem>>, %arg11: memref<1x120xf32, #tpu.memory_space<vmem>>, %arg12: memref<120x84xbf16, #tpu.memory_space<vmem>>, %arg13: memref<1x84xf32, #tpu.memory_space<vmem>>, %arg14: memref<84x128xbf16, #tpu.memory_space<vmem>>, %arg15: memref<1x128xf32, #tpu.memory_space<vmem>>, %arg16: memref<1x8x128xf32, #tpu.memory_space<vmem>>, %arg17: memref<14x84xf32, #tpu.memory_space<vmem>>, %arg18: memref<5x80xf32, #tpu.memory_space<vmem>>) attributes {dimension_semantics = [#tpu.dimension_semantics<parallel>], iteration_bounds = array<i64: 2>, scalar_prefetch = 0 : i64, scratch_operands = 2 : i64, tpu.core_type = #tpu.core_type<tc>, window_params = [{transform_indices = @transform_0, window_bounds = array<i64: 1, 32, 32>}, {pipeline_mode = #tpu.pipeline_mode<synchronous>, transform_indices = @transform_1, window_bounds = array<i64: 5, 32, 168>}, {pipeline_mode = #tpu.pipeline_mode<synchronous>, transform_indices = @transform_2, window_bounds = array<i64: 1, 168>}, {pipeline_mode = #tpu.pipeline_mode<synchronous>, transform_indices = @transform_3, window_bounds = array<i64: 14, 28>}, {pipeline_mode = #tpu.pipeline_mode<synchronous>, transform_indices = @transform_4, window_bounds = array<i64: 168, 84>}, {pipeline_mode = #tpu.pipeline_mode<synchronous>, transform_indices = @transform_5, window_bounds = array<i64: 5, 84, 160>}, {pipeline_mode = #tpu.pipeline_mode<synchronous>, transform_indices = @transform_6, window_bounds = array<i64: 1, 160>}, {pipeline_mode = #tpu.pipeline_mode<synchronous>, transform_indices = @transform_7, window_bounds = array<i64: 5, 10>}, {pipeline_mode = #tpu.pipeline_mode<synchronous>, transform_indices = @transform_8, window_bounds = array<i64: 160, 80>}, {pipeline_mode = #tpu.pipeline_mode<synchronous>, transform_indices = @transform_9, window_bounds = array<i64: 5, 80, 120>}, {pipeline_mode = #tpu.pipeline_mode<synchronous>, transform_indices = @transform_10, window_bounds = array<i64: 1, 120>}, {pipeline_mode = #tpu.pipeline_mode<synchronous>, transform_indices = @transform_11, window_bounds = array<i64: 120, 84>}, {pipeline_mode = #tpu.pipeline_mode<synchronous>, transform_indices = @transform_12, window_bounds = array<i64: 1, 84>}, {pipeline_mode = #tpu.pipeline_mode<synchronous>, transform_indices = @transform_13, window_bounds = array<i64: 84, 128>}, {pipeline_mode = #tpu.pipeline_mode<synchronous>, transform_indices = @transform_14, window_bounds = array<i64: 1, 128>}, {transform_indices = @transform_15, window_bounds = array<i64: 1, 8, 128>}]} {
    %cst = arith.constant 0.000000e+00 : f32
    %0 = vector.broadcast %cst : f32 to vector<28x168xf32>
    %c0 = arith.constant 0 : index
    %c0_0 = arith.constant 0 : index
    %c0_1 = arith.constant 0 : index
    %1 = vector.load %arg1[%c0, %c0_0, %c0_1] : memref<1x32x32xf32, #tpu.memory_space<vmem>>, vector<1x28x32xf32>
    %2 = vector.shape_cast %1 : vector<1x28x32xf32> to vector<28x32xf32>
    %3 = arith.truncf %2 : vector<28x32xf32> to vector<28x32xbf16>
    %c0_2 = arith.constant 0 : index
    %c0_3 = arith.constant 0 : index
    %c0_4 = arith.constant 0 : index
    %4 = vector.load %arg2[%c0_2, %c0_3, %c0_4] : memref<5x32x168xbf16, #tpu.memory_space<vmem>>, vector<1x32x168xbf16>
    %5 = vector.shape_cast %4 : vector<1x32x168xbf16> to vector<32x168xbf16>
    %cst_5 = arith.constant dense<0.000000e+00> : vector<28x168xf32>
    %6 = tpu.matmul %3, %5, %cst_5 {dimension_numbers = #tpu.dot_dimension_numbers<[1], [0], [0], [1], [0, 0, 1, 1], [], []>} : vector<28x32xbf16>, vector<32x168xbf16>, vector<28x168xf32> -> vector<28x168xf32>
    %7 = arith.addf %0, %6 : vector<28x168xf32>
    %c0_6 = arith.constant 0 : index
    %c1 = arith.constant 1 : index
    %c0_7 = arith.constant 0 : index
    %8 = vector.load %arg1[%c0_6, %c1, %c0_7] : memref<1x32x32xf32, #tpu.memory_space<vmem>>, vector<1x28x32xf32>
    %9 = vector.shape_cast %8 : vector<1x28x32xf32> to vector<28x32xf32>
    %10 = arith.truncf %9 : vector<28x32xf32> to vector<28x32xbf16>
    %c1_8 = arith.constant 1 : index
    %c0_9 = arith.constant 0 : index
    %c0_10 = arith.constant 0 : index
    %11 = vector.load %arg2[%c1_8, %c0_9, %c0_10] : memref<5x32x168xbf16, #tpu.memory_space<vmem>>, vector<1x32x168xbf16>
    %12 = vector.shape_cast %11 : vector<1x32x168xbf16> to vector<32x168xbf16>
    %cst_11 = arith.constant dense<0.000000e+00> : vector<28x168xf32>
    %13 = tpu.matmul %10, %12, %cst_11 {dimension_numbers = #tpu.dot_dimension_numbers<[1], [0], [0], [1], [0, 0, 1, 1], [], []>} : vector<28x32xbf16>, vector<32x168xbf16>, vector<28x168xf32> -> vector<28x168xf32>
    %14 = arith.addf %7, %13 : vector<28x168xf32>
    %c0_12 = arith.constant 0 : index
    %c2 = arith.constant 2 : index
    %c0_13 = arith.constant 0 : index
    %15 = vector.load %arg1[%c0_12, %c2, %c0_13] : memref<1x32x32xf32, #tpu.memory_space<vmem>>, vector<1x28x32xf32>
    %16 = vector.shape_cast %15 : vector<1x28x32xf32> to vector<28x32xf32>
    %17 = arith.truncf %16 : vector<28x32xf32> to vector<28x32xbf16>
    %c2_14 = arith.constant 2 : index
    %c0_15 = arith.constant 0 : index
    %c0_16 = arith.constant 0 : index
    %18 = vector.load %arg2[%c2_14, %c0_15, %c0_16] : memref<5x32x168xbf16, #tpu.memory_space<vmem>>, vector<1x32x168xbf16>
    %19 = vector.shape_cast %18 : vector<1x32x168xbf16> to vector<32x168xbf16>
    %cst_17 = arith.constant dense<0.000000e+00> : vector<28x168xf32>
    %20 = tpu.matmul %17, %19, %cst_17 {dimension_numbers = #tpu.dot_dimension_numbers<[1], [0], [0], [1], [0, 0, 1, 1], [], []>} : vector<28x32xbf16>, vector<32x168xbf16>, vector<28x168xf32> -> vector<28x168xf32>
    %21 = arith.addf %14, %20 : vector<28x168xf32>
    %c0_18 = arith.constant 0 : index
    %c3 = arith.constant 3 : index
    %c0_19 = arith.constant 0 : index
    %22 = vector.load %arg1[%c0_18, %c3, %c0_19] : memref<1x32x32xf32, #tpu.memory_space<vmem>>, vector<1x28x32xf32>
    %23 = vector.shape_cast %22 : vector<1x28x32xf32> to vector<28x32xf32>
    %24 = arith.truncf %23 : vector<28x32xf32> to vector<28x32xbf16>
    %c3_20 = arith.constant 3 : index
    %c0_21 = arith.constant 0 : index
    %c0_22 = arith.constant 0 : index
    %25 = vector.load %arg2[%c3_20, %c0_21, %c0_22] : memref<5x32x168xbf16, #tpu.memory_space<vmem>>, vector<1x32x168xbf16>
    %26 = vector.shape_cast %25 : vector<1x32x168xbf16> to vector<32x168xbf16>
    %cst_23 = arith.constant dense<0.000000e+00> : vector<28x168xf32>
    %27 = tpu.matmul %24, %26, %cst_23 {dimension_numbers = #tpu.dot_dimension_numbers<[1], [0], [0], [1], [0, 0, 1, 1], [], []>} : vector<28x32xbf16>, vector<32x168xbf16>, vector<28x168xf32> -> vector<28x168xf32>
    %28 = arith.addf %21, %27 : vector<28x168xf32>
    %c0_24 = arith.constant 0 : index
    %c4 = arith.constant 4 : index
    %c0_25 = arith.constant 0 : index
    %29 = vector.load %arg1[%c0_24, %c4, %c0_25] : memref<1x32x32xf32, #tpu.memory_space<vmem>>, vector<1x28x32xf32>
    %30 = vector.shape_cast %29 : vector<1x28x32xf32> to vector<28x32xf32>
    %31 = arith.truncf %30 : vector<28x32xf32> to vector<28x32xbf16>
    %c4_26 = arith.constant 4 : index
    %c0_27 = arith.constant 0 : index
    %c0_28 = arith.constant 0 : index
    %32 = vector.load %arg2[%c4_26, %c0_27, %c0_28] : memref<5x32x168xbf16, #tpu.memory_space<vmem>>, vector<1x32x168xbf16>
    %33 = vector.shape_cast %32 : vector<1x32x168xbf16> to vector<32x168xbf16>
    %cst_29 = arith.constant dense<0.000000e+00> : vector<28x168xf32>
    %34 = tpu.matmul %31, %33, %cst_29 {dimension_numbers = #tpu.dot_dimension_numbers<[1], [0], [0], [1], [0, 0, 1, 1], [], []>} : vector<28x32xbf16>, vector<32x168xbf16>, vector<28x168xf32> -> vector<28x168xf32>
    %35 = arith.addf %28, %34 : vector<28x168xf32>
    %c0_30 = arith.constant 0 : index
    %c0_31 = arith.constant 0 : index
    %36 = vector.load %arg3[%c0_30, %c0_31] : memref<1x168xf32, #tpu.memory_space<vmem>>, vector<1x168xf32>
    %37 = vector.broadcast %36 : vector<1x168xf32> to vector<28x168xf32>
    %38 = arith.addf %35, %37 : vector<28x168xf32>
    %39 = math.tanh %38 : vector<28x168xf32>
    %cst_32 = arith.constant 1.715900e+00 : f32
    %40 = vector.broadcast %cst_32 : f32 to vector<28x168xf32>
    %41 = arith.mulf %40, %39 : vector<28x168xf32>
    %42 = arith.truncf %41 : vector<28x168xf32> to vector<28x168xbf16>
    %c0_33 = arith.constant 0 : index
    %c0_34 = arith.constant 0 : index
    %43 = vector.load %arg4[%c0_33, %c0_34] : memref<14x28xbf16, #tpu.memory_space<vmem>>, vector<14x28xbf16>
    %cst_35 = arith.constant dense<0.000000e+00> : vector<14x168xf32>
    %44 = tpu.matmul %43, %42, %cst_35 {dimension_numbers = #tpu.dot_dimension_numbers<[1], [0], [0], [1], [0, 0, 1, 1], [], []>} : vector<14x28xbf16>, vector<28x168xbf16>, vector<14x168xf32> -> vector<14x168xf32>
    %45 = arith.truncf %44 : vector<14x168xf32> to vector<14x168xbf16>
    %c0_36 = arith.constant 0 : index
    %c0_37 = arith.constant 0 : index
    %46 = vector.load %arg5[%c0_36, %c0_37] : memref<168x84xbf16, #tpu.memory_space<vmem>>, vector<168x84xbf16>
    %cst_38 = arith.constant dense<0.000000e+00> : vector<14x84xf32>
    %47 = tpu.matmul %45, %46, %cst_38 {dimension_numbers = #tpu.dot_dimension_numbers<[1], [0], [0], [1], [0, 0, 1, 1], [], []>} : vector<14x168xbf16>, vector<168x84xbf16>, vector<14x84xf32> -> vector<14x84xf32>
    %c0_39 = arith.constant 0 : index
    %c0_40 = arith.constant 0 : index
    %48 = vector.load %arg17[%c0_39, %c0_40] : memref<14x84xf32, #tpu.memory_space<vmem>>, vector<14x84xf32>
    tpu.vector_store %arg17[%c0_39, %c0_40], %47 {strides = array<i32>} : memref<14x84xf32, #tpu.memory_space<vmem>>, vector<14x84xf32>,
    %cst_41 = arith.constant 0.000000e+00 : f32
    %49 = vector.broadcast %cst_41 : f32 to vector<10x160xf32>
    %c0_42 = arith.constant 0 : index
    %c0_43 = arith.constant 0 : index
    %50 = vector.load %arg17[%c0_42, %c0_43] : memref<14x84xf32, #tpu.memory_space<vmem>>, vector<10x84xf32>
    %51 = arith.truncf %50 : vector<10x84xf32> to vector<10x84xbf16>
    %c0_44 = arith.constant 0 : index
    %c0_45 = arith.constant 0 : index
    %c0_46 = arith.constant 0 : index
    %52 = vector.load %arg6[%c0_44, %c0_45, %c0_46] : memref<5x84x160xbf16, #tpu.memory_space<vmem>>, vector<1x84x160xbf16>
    %53 = vector.shape_cast %52 : vector<1x84x160xbf16> to vector<84x160xbf16>
    %cst_47 = arith.constant dense<0.000000e+00> : vector<10x160xf32>
    %54 = tpu.matmul %51, %53, %cst_47 {dimension_numbers = #tpu.dot_dimension_numbers<[1], [0], [0], [1], [0, 0, 1, 1], [], []>} : vector<10x84xbf16>, vector<84x160xbf16>, vector<10x160xf32> -> vector<10x160xf32>
    %55 = arith.addf %49, %54 : vector<10x160xf32>
    %c1_48 = arith.constant 1 : index
    %c0_49 = arith.constant 0 : index
    %56 = vector.load %arg17[%c1_48, %c0_49] : memref<14x84xf32, #tpu.memory_space<vmem>>, vector<10x84xf32>
    %57 = arith.truncf %56 : vector<10x84xf32> to vector<10x84xbf16>
    %c1_50 = arith.constant 1 : index
    %c0_51 = arith.constant 0 : index
    %c0_52 = arith.constant 0 : index
    %58 = vector.load %arg6[%c1_50, %c0_51, %c0_52] : memref<5x84x160xbf16, #tpu.memory_space<vmem>>, vector<1x84x160xbf16>
    %59 = vector.shape_cast %58 : vector<1x84x160xbf16> to vector<84x160xbf16>
    %cst_53 = arith.constant dense<0.000000e+00> : vector<10x160xf32>
    %60 = tpu.matmul %57, %59, %cst_53 {dimension_numbers = #tpu.dot_dimension_numbers<[1], [0], [0], [1], [0, 0, 1, 1], [], []>} : vector<10x84xbf16>, vector<84x160xbf16>, vector<10x160xf32> -> vector<10x160xf32>
    %61 = arith.addf %55, %60 : vector<10x160xf32>
    %c2_54 = arith.constant 2 : index
    %c0_55 = arith.constant 0 : index
    %62 = vector.load %arg17[%c2_54, %c0_55] : memref<14x84xf32, #tpu.memory_space<vmem>>, vector<10x84xf32>
    %63 = arith.truncf %62 : vector<10x84xf32> to vector<10x84xbf16>
    %c2_56 = arith.constant 2 : index
    %c0_57 = arith.constant 0 : index
    %c0_58 = arith.constant 0 : index
    %64 = vector.load %arg6[%c2_56, %c0_57, %c0_58] : memref<5x84x160xbf16, #tpu.memory_space<vmem>>, vector<1x84x160xbf16>
    %65 = vector.shape_cast %64 : vector<1x84x160xbf16> to vector<84x160xbf16>
    %cst_59 = arith.constant dense<0.000000e+00> : vector<10x160xf32>
    %66 = tpu.matmul %63, %65, %cst_59 {dimension_numbers = #tpu.dot_dimension_numbers<[1], [0], [0], [1], [0, 0, 1, 1], [], []>} : vector<10x84xbf16>, vector<84x160xbf16>, vector<10x160xf32> -> vector<10x160xf32>
    %67 = arith.addf %61, %66 : vector<10x160xf32>
    %c3_60 = arith.constant 3 : index
    %c0_61 = arith.constant 0 : index
    %68 = vector.load %arg17[%c3_60, %c0_61] : memref<14x84xf32, #tpu.memory_space<vmem>>, vector<10x84xf32>
    %69 = arith.truncf %68 : vector<10x84xf32> to vector<10x84xbf16>
    %c3_62 = arith.constant 3 : index
    %c0_63 = arith.constant 0 : index
    %c0_64 = arith.constant 0 : index
    %70 = vector.load %arg6[%c3_62, %c0_63, %c0_64] : memref<5x84x160xbf16, #tpu.memory_space<vmem>>, vector<1x84x160xbf16>
    %71 = vector.shape_cast %70 : vector<1x84x160xbf16> to vector<84x160xbf16>
    %cst_65 = arith.constant dense<0.000000e+00> : vector<10x160xf32>
    %72 = tpu.matmul %69, %71, %cst_65 {dimension_numbers = #tpu.dot_dimension_numbers<[1], [0], [0], [1], [0, 0, 1, 1], [], []>} : vector<10x84xbf16>, vector<84x160xbf16>, vector<10x160xf32> -> vector<10x160xf32>
    %73 = arith.addf %67, %72 : vector<10x160xf32>
    %c4_66 = arith.constant 4 : index
    %c0_67 = arith.constant 0 : index
    %74 = vector.load %arg17[%c4_66, %c0_67] : memref<14x84xf32, #tpu.memory_space<vmem>>, vector<10x84xf32>
    %75 = arith.truncf %74 : vector<10x84xf32> to vector<10x84xbf16>
    %c4_68 = arith.constant 4 : index
    %c0_69 = arith.constant 0 : index
    %c0_70 = arith.constant 0 : index
    %76 = vector.load %arg6[%c4_68, %c0_69, %c0_70] : memref<5x84x160xbf16, #tpu.memory_space<vmem>>, vector<1x84x160xbf16>
    %77 = vector.shape_cast %76 : vector<1x84x160xbf16> to vector<84x160xbf16>
    %cst_71 = arith.constant dense<0.000000e+00> : vector<10x160xf32>
    %78 = tpu.matmul %75, %77, %cst_71 {dimension_numbers = #tpu.dot_dimension_numbers<[1], [0], [0], [1], [0, 0, 1, 1], [], []>} : vector<10x84xbf16>, vector<84x160xbf16>, vector<10x160xf32> -> vector<10x160xf32>
    %79 = arith.addf %73, %78 : vector<10x160xf32>
    %c0_72 = arith.constant 0 : index
    %c0_73 = arith.constant 0 : index
    %80 = vector.load %arg7[%c0_72, %c0_73] : memref<1x160xf32, #tpu.memory_space<vmem>>, vector<1x160xf32>
    %81 = vector.broadcast %80 : vector<1x160xf32> to vector<10x160xf32>
    %82 = arith.addf %79, %81 : vector<10x160xf32>
    %83 = math.tanh %82 : vector<10x160xf32>
    %cst_74 = arith.constant 1.715900e+00 : f32
    %84 = vector.broadcast %cst_74 : f32 to vector<10x160xf32>
    %85 = arith.mulf %84, %83 : vector<10x160xf32>
    %86 = arith.truncf %85 : vector<10x160xf32> to vector<10x160xbf16>
    %c0_75 = arith.constant 0 : index
    %c0_76 = arith.constant 0 : index
    %87 = vector.load %arg8[%c0_75, %c0_76] : memref<5x10xbf16, #tpu.memory_space<vmem>>, vector<5x10xbf16>
    %cst_77 = arith.constant dense<0.000000e+00> : vector<5x160xf32>
    %88 = tpu.matmul %87, %86, %cst_77 {dimension_numbers = #tpu.dot_dimension_numbers<[1], [0], [0], [1], [0, 0, 1, 1], [], []>} : vector<5x10xbf16>, vector<10x160xbf16>, vector<5x160xf32> -> vector<5x160xf32>
    %89 = arith.truncf %88 : vector<5x160xf32> to vector<5x160xbf16>
    %c0_78 = arith.constant 0 : index
    %c0_79 = arith.constant 0 : index
    %90 = vector.load %arg9[%c0_78, %c0_79] : memref<160x80xbf16, #tpu.memory_space<vmem>>, vector<160x80xbf16>
    %cst_80 = arith.constant dense<0.000000e+00> : vector<5x80xf32>
    %91 = tpu.matmul %89, %90, %cst_80 {dimension_numbers = #tpu.dot_dimension_numbers<[1], [0], [0], [1], [0, 0, 1, 1], [], []>} : vector<5x160xbf16>, vector<160x80xbf16>, vector<5x80xf32> -> vector<5x80xf32>
    %c0_81 = arith.constant 0 : index
    %c0_82 = arith.constant 0 : index
    %92 = vector.load %arg18[%c0_81, %c0_82] : memref<5x80xf32, #tpu.memory_space<vmem>>, vector<5x80xf32>
    tpu.vector_store %arg18[%c0_81, %c0_82], %91 {strides = array<i32>} : memref<5x80xf32, #tpu.memory_space<vmem>>, vector<5x80xf32>,
    %cst_83 = arith.constant 0.000000e+00 : f32
    %93 = vector.broadcast %cst_83 : f32 to vector<1x120xf32>
    %c0_84 = arith.constant 0 : index
    %c0_85 = arith.constant 0 : index
    %94 = vector.load %arg18[%c0_84, %c0_85] : memref<5x80xf32, #tpu.memory_space<vmem>>, vector<1x80xf32>
    %95 = arith.truncf %94 : vector<1x80xf32> to vector<1x80xbf16>
    %c0_86 = arith.constant 0 : index
    %c0_87 = arith.constant 0 : index
    %c0_88 = arith.constant 0 : index
    %96 = vector.load %arg10[%c0_86, %c0_87, %c0_88] : memref<5x80x120xbf16, #tpu.memory_space<vmem>>, vector<1x80x120xbf16>
    %97 = vector.shape_cast %96 : vector<1x80x120xbf16> to vector<80x120xbf16>
    %cst_89 = arith.constant dense<0.000000e+00> : vector<1x120xf32>
    %98 = tpu.matmul %95, %97, %cst_89 {dimension_numbers = #tpu.dot_dimension_numbers<[1], [0], [0], [1], [0, 0, 1, 1], [], []>} : vector<1x80xbf16>, vector<80x120xbf16>, vector<1x120xf32> -> vector<1x120xf32>
    %99 = arith.addf %93, %98 : vector<1x120xf32>
    %c1_90 = arith.constant 1 : index
    %c0_91 = arith.constant 0 : index
    %100 = vector.load %arg18[%c1_90, %c0_91] : memref<5x80xf32, #tpu.memory_space<vmem>>, vector<1x80xf32>
    %101 = arith.truncf %100 : vector<1x80xf32> to vector<1x80xbf16>
    %c1_92 = arith.constant 1 : index
    %c0_93 = arith.constant 0 : index
    %c0_94 = arith.constant 0 : index
    %102 = vector.load %arg10[%c1_92, %c0_93, %c0_94] : memref<5x80x120xbf16, #tpu.memory_space<vmem>>, vector<1x80x120xbf16>
    %103 = vector.shape_cast %102 : vector<1x80x120xbf16> to vector<80x120xbf16>
    %cst_95 = arith.constant dense<0.000000e+00> : vector<1x120xf32>
    %104 = tpu.matmul %101, %103, %cst_95 {dimension_numbers = #tpu.dot_dimension_numbers<[1], [0], [0], [1], [0, 0, 1, 1], [], []>} : vector<1x80xbf16>, vector<80x120xbf16>, vector<1x120xf32> -> vector<1x120xf32>
    %105 = arith.addf %99, %104 : vector<1x120xf32>
    %c2_96 = arith.constant 2 : index
    %c0_97 = arith.constant 0 : index
    %106 = vector.load %arg18[%c2_96, %c0_97] : memref<5x80xf32, #tpu.memory_space<vmem>>, vector<1x80xf32>
    %107 = arith.truncf %106 : vector<1x80xf32> to vector<1x80xbf16>
    %c2_98 = arith.constant 2 : index
    %c0_99 = arith.constant 0 : index
    %c0_100 = arith.constant 0 : index
    %108 = vector.load %arg10[%c2_98, %c0_99, %c0_100] : memref<5x80x120xbf16, #tpu.memory_space<vmem>>, vector<1x80x120xbf16>
    %109 = vector.shape_cast %108 : vector<1x80x120xbf16> to vector<80x120xbf16>
    %cst_101 = arith.constant dense<0.000000e+00> : vector<1x120xf32>
    %110 = tpu.matmul %107, %109, %cst_101 {dimension_numbers = #tpu.dot_dimension_numbers<[1], [0], [0], [1], [0, 0, 1, 1], [], []>} : vector<1x80xbf16>, vector<80x120xbf16>, vector<1x120xf32> -> vector<1x120xf32>
    %111 = arith.addf %105, %110 : vector<1x120xf32>
    %c3_102 = arith.constant 3 : index
    %c0_103 = arith.constant 0 : index
    %112 = vector.load %arg18[%c3_102, %c0_103] : memref<5x80xf32, #tpu.memory_space<vmem>>, vector<1x80xf32>
    %113 = arith.truncf %112 : vector<1x80xf32> to vector<1x80xbf16>
    %c3_104 = arith.constant 3 : index
    %c0_105 = arith.constant 0 : index
    %c0_106 = arith.constant 0 : index
    %114 = vector.load %arg10[%c3_104, %c0_105, %c0_106] : memref<5x80x120xbf16, #tpu.memory_space<vmem>>, vector<1x80x120xbf16>
    %115 = vector.shape_cast %114 : vector<1x80x120xbf16> to vector<80x120xbf16>
    %cst_107 = arith.constant dense<0.000000e+00> : vector<1x120xf32>
    %116 = tpu.matmul %113, %115, %cst_107 {dimension_numbers = #tpu.dot_dimension_numbers<[1], [0], [0], [1], [0, 0, 1, 1], [], []>} : vector<1x80xbf16>, vector<80x120xbf16>, vector<1x120xf32> -> vector<1x120xf32>
    %117 = arith.addf %111, %116 : vector<1x120xf32>
    %c4_108 = arith.constant 4 : index
    %c0_109 = arith.constant 0 : index
    %118 = vector.load %arg18[%c4_108, %c0_109] : memref<5x80xf32, #tpu.memory_space<vmem>>, vector<1x80xf32>
    %119 = arith.truncf %118 : vector<1x80xf32> to vector<1x80xbf16>
    %c4_110 = arith.constant 4 : index
    %c0_111 = arith.constant 0 : index
    %c0_112 = arith.constant 0 : index
    %120 = vector.load %arg10[%c4_110, %c0_111, %c0_112] : memref<5x80x120xbf16, #tpu.memory_space<vmem>>, vector<1x80x120xbf16>
    %121 = vector.shape_cast %120 : vector<1x80x120xbf16> to vector<80x120xbf16>
    %cst_113 = arith.constant dense<0.000000e+00> : vector<1x120xf32>
    %122 = tpu.matmul %119, %121, %cst_113 {dimension_numbers = #tpu.dot_dimension_numbers<[1], [0], [0], [1], [0, 0, 1, 1], [], []>} : vector<1x80xbf16>, vector<80x120xbf16>, vector<1x120xf32> -> vector<1x120xf32>
    %123 = arith.addf %117, %122 : vector<1x120xf32>
    %c0_114 = arith.constant 0 : index
    %c0_115 = arith.constant 0 : index
    %124 = vector.load %arg11[%c0_114, %c0_115] : memref<1x120xf32, #tpu.memory_space<vmem>>, vector<1x120xf32>
    %125 = arith.addf %123, %124 : vector<1x120xf32>
    %126 = math.tanh %125 : vector<1x120xf32>
    %cst_116 = arith.constant 1.715900e+00 : f32
    %127 = vector.broadcast %cst_116 : f32 to vector<1x120xf32>
    %128 = arith.mulf %127, %126 : vector<1x120xf32>
    %129 = arith.truncf %128 : vector<1x120xf32> to vector<1x120xbf16>
    %c0_117 = arith.constant 0 : index
    %c0_118 = arith.constant 0 : index
    %130 = vector.load %arg12[%c0_117, %c0_118] : memref<120x84xbf16, #tpu.memory_space<vmem>>, vector<120x84xbf16>
    %cst_119 = arith.constant dense<0.000000e+00> : vector<1x84xf32>
    %131 = tpu.matmul %129, %130, %cst_119 {dimension_numbers = #tpu.dot_dimension_numbers<[1], [0], [0], [1], [0, 0, 1, 1], [], []>} : vector<1x120xbf16>, vector<120x84xbf16>, vector<1x84xf32> -> vector<1x84xf32>
    %c0_120 = arith.constant 0 : index
    %c0_121 = arith.constant 0 : index
    %132 = vector.load %arg13[%c0_120, %c0_121] : memref<1x84xf32, #tpu.memory_space<vmem>>, vector<1x84xf32>
    %133 = arith.addf %131, %132 : vector<1x84xf32>
    %134 = math.tanh %133 : vector<1x84xf32>
    %cst_122 = arith.constant 1.715900e+00 : f32
    %135 = vector.broadcast %cst_122 : f32 to vector<1x84xf32>
    %136 = arith.mulf %135, %134 : vector<1x84xf32>
    %137 = arith.truncf %136 : vector<1x84xf32> to vector<1x84xbf16>
    %c0_123 = arith.constant 0 : index
    %c0_124 = arith.constant 0 : index
    %138 = vector.load %arg14[%c0_123, %c0_124] : memref<84x128xbf16, #tpu.memory_space<vmem>>, vector<84x128xbf16>
    %cst_125 = arith.constant dense<0.000000e+00> : vector<1x128xf32>
    %139 = tpu.matmul %137, %138, %cst_125 {dimension_numbers = #tpu.dot_dimension_numbers<[1], [0], [0], [1], [0, 0, 1, 1], [], []>} : vector<1x84xbf16>, vector<84x128xbf16>, vector<1x128xf32> -> vector<1x128xf32>
    %140 = arith.mulf %136, %136 : vector<1x84xf32>
    %cst_126 = arith.constant dense<0.000000e+00> : vector<1xf32>
    %141 = vector.multi_reduction <add>, %140, %cst_126 [1] : vector<1x84xf32> to vector<1xf32>
    %142 = vector.shape_cast %141 : vector<1xf32> to vector<1x1xf32>
    %c0_127 = arith.constant 0 : index
    %c0_128 = arith.constant 0 : index
    %143 = vector.load %arg15[%c0_127, %c0_128] : memref<1x128xf32, #tpu.memory_space<vmem>>, vector<1x128xf32>
    %144 = vector.broadcast %142 : vector<1x1xf32> to vector<1x128xf32>
    %145 = arith.addf %144, %143 : vector<1x128xf32>
    %cst_129 = arith.constant 2.000000e+00 : f32
    %146 = vector.broadcast %cst_129 : f32 to vector<1x128xf32>
    %147 = arith.mulf %146, %139 : vector<1x128xf32>
    %148 = arith.subf %145, %147 : vector<1x128xf32>
    %149 = vector.shape_cast %148 : vector<1x128xf32> to vector<1x128xf32>
    %150 = vector.broadcast %149 : vector<1x128xf32> to vector<8x128xf32>
    %c0_130 = arith.constant 0 : index
    %c0_131 = arith.constant 0 : index
    %c0_132 = arith.constant 0 : index
    %151 = vector.load %arg16[%c0_130, %c0_131, %c0_132] : memref<1x8x128xf32, #tpu.memory_space<vmem>>, vector<1x8x128xf32>
    %152 = vector.shape_cast %151 : vector<1x8x128xf32> to vector<8x128xf32>
    %153 = vector.shape_cast %150 : vector<8x128xf32> to vector<1x8x128xf32>
    tpu.vector_store %arg16[%c0_130, %c0_131, %c0_132], %153 {strides = array<i32>} : memref<1x8x128xf32, #tpu.memory_space<vmem>>, vector<1x8x128xf32>,
    return
  }
  func.func @transform_0(%arg0: i32) -> (i32, i32, i32) {
    %c0_i32 = arith.constant 0 : i32
    %c0_i32_0 = arith.constant 0 : i32
    %c0_i32_1 = arith.constant 0 : i32
    return %arg0, %c0_i32, %c0_i32_0 : i32, i32, i32
  }
  func.func @transform_1(%arg0: i32) -> (i32, i32, i32) {
    %c0_i32 = arith.constant 0 : i32
    %c0_i32_0 = arith.constant 0 : i32
    %c0_i32_1 = arith.constant 0 : i32
    %c0_i32_2 = arith.constant 0 : i32
    return %c0_i32, %c0_i32_0, %c0_i32_1 : i32, i32, i32
  }
  func.func @transform_2(%arg0: i32) -> (i32, i32) {
    %c0_i32 = arith.constant 0 : i32
    %c0_i32_0 = arith.constant 0 : i32
    %c0_i32_1 = arith.constant 0 : i32
    return %c0_i32, %c0_i32_0 : i32, i32
  }
  func.func @transform_3(%arg0: i32) -> (i32, i32) {
    %c0_i32 = arith.constant 0 : i32
    %c0_i32_0 = arith.constant 0 : i32
    %c0_i32_1 = arith.constant 0 : i32
    return %c0_i32, %c0_i32_0 : i32, i32
  }
  func.func @transform_4(%arg0: i32) -> (i32, i32) {
    %c0_i32 = arith.constant 0 : i32
    %c0_i32_0 = arith.constant 0 : i32
    %c0_i32_1 = arith.constant 0 : i32
    return %c0_i32, %c0_i32_0 : i32, i32
  }
  func.func @transform_5(%arg0: i32) -> (i32, i32, i32) {
    %c0_i32 = arith.constant 0 : i32
    %c0_i32_0 = arith.constant 0 : i32
    %c0_i32_1 = arith.constant 0 : i32
    %c0_i32_2 = arith.constant 0 : i32
    return %c0_i32, %c0_i32_0, %c0_i32_1 : i32, i32, i32
  }
  func.func @transform_6(%arg0: i32) -> (i32, i32) {
    %c0_i32 = arith.constant 0 : i32
    %c0_i32_0 = arith.constant 0 : i32
    %c0_i32_1 = arith.constant 0 : i32
    return %c0_i32, %c0_i32_0 : i32, i32
  }
  func.func @transform_7(%arg0: i32) -> (i32, i32) {
    %c0_i32 = arith.constant 0 : i32
    %c0_i32_0 = arith.constant 0 : i32
    %c0_i32_1 = arith.constant 0 : i32
    return %c0_i32, %c0_i32_0 : i32, i32
  }
  func.func @transform_8(%arg0: i32) -> (i32, i32) {
    %c0_i32 = arith.constant 0 : i32
    %c0_i32_0 = arith.constant 0 : i32
    %c0_i32_1 = arith.constant 0 : i32
    return %c0_i32, %c0_i32_0 : i32, i32
  }
  func.func @transform_9(%arg0: i32) -> (i32, i32, i32) {
    %c0_i32 = arith.constant 0 : i32
    %c0_i32_0 = arith.constant 0 : i32
    %c0_i32_1 = arith.constant 0 : i32
    %c0_i32_2 = arith.constant 0 : i32
    return %c0_i32, %c0_i32_0, %c0_i32_1 : i32, i32, i32
  }
  func.func @transform_10(%arg0: i32) -> (i32, i32) {
    %c0_i32 = arith.constant 0 : i32
    %c0_i32_0 = arith.constant 0 : i32
    %c0_i32_1 = arith.constant 0 : i32
    return %c0_i32, %c0_i32_0 : i32, i32
  }
  func.func @transform_11(%arg0: i32) -> (i32, i32) {
    %c0_i32 = arith.constant 0 : i32
    %c0_i32_0 = arith.constant 0 : i32
    %c0_i32_1 = arith.constant 0 : i32
    return %c0_i32, %c0_i32_0 : i32, i32
  }
  func.func @transform_12(%arg0: i32) -> (i32, i32) {
    %c0_i32 = arith.constant 0 : i32
    %c0_i32_0 = arith.constant 0 : i32
    %c0_i32_1 = arith.constant 0 : i32
    return %c0_i32, %c0_i32_0 : i32, i32
  }
  func.func @transform_13(%arg0: i32) -> (i32, i32) {
    %c0_i32 = arith.constant 0 : i32
    %c0_i32_0 = arith.constant 0 : i32
    %c0_i32_1 = arith.constant 0 : i32
    return %c0_i32, %c0_i32_0 : i32, i32
  }
  func.func @transform_14(%arg0: i32) -> (i32, i32) {
    %c0_i32 = arith.constant 0 : i32
    %c0_i32_0 = arith.constant 0 : i32
    %c0_i32_1 = arith.constant 0 : i32
    return %c0_i32, %c0_i32_0 : i32, i32
  }
  func.func @transform_15(%arg0: i32) -> (i32, i32, i32) {
    %c0_i32 = arith.constant 0 : i32
    %c0_i32_0 = arith.constant 0 : i32
    %c0_i32_1 = arith.constant 0 : i32
    return %arg0, %c0_i32, %c0_i32_0 : i32, i32, i32
  }
}

</mosaic_0001>

<llo_original>
// kernel: lenet5_forward.1
$region0: #{lenet5_forward.1}
  #allocation0 [shape = 'u32[]', space=smem, size = 0x4, offset = 0x4, fixed_abs, tag = 'smem constant byte address 0x4 - core index']
  #allocation1 [shape = 'u32[144,128]{1,0:T(1,128)}', space=vmem, size = 0x12000, scoped, tag = 'internal scratch']
  #allocation2 [shape = 'f32[14,84]{1,0:T(8,128)}', space=vmem, size = 0x2000, scoped, tag = 'scratch operand']
  #allocation3 [shape = 'f32[5,80]{1,0:T(8,128)}', space=vmem, size = 0x1000, scoped, tag = 'scratch operand']
  %s0 = inlined_call_operand.vmem [shape: f32[2,32,32], index: 0, kind: input, shape index: {}]
  %s1 = inlined_call_operand.vmem [shape: bf16[5,32,168], index: 1, kind: input, shape index: {}]
  %s2 = inlined_call_operand.vmem [shape: f32[1,168], index: 2, kind: input, shape index: {}]
  %s3 = inlined_call_operand.vmem [shape: bf16[14,28], index: 3, kind: input, shape index: {}]
  %s4 = inlined_call_operand.vmem [shape: bf16[168,84], index: 4, kind: input, shape index: {}]
  %s5 = inlined_call_operand.vmem [shape: bf16[5,84,160], index: 5, kind: input, shape index: {}]
  %s6 = inlined_call_operand.vmem [shape: f32[1,160], index: 6, kind: input, shape index: {}]
  %s7 = inlined_call_operand.vmem [shape: bf16[5,10], index: 7, kind: input, shape index: {}]
  %s8 = inlined_call_operand.vmem [shape: bf16[160,80], index: 8, kind: input, shape index: {}]
  %s9 = inlined_call_operand.vmem [shape: bf16[5,80,120], index: 9, kind: input, shape index: {}]
  %s10 = inlined_call_operand.vmem [shape: f32[1,120], index: 10, kind: input, shape index: {}]
  %s11 = inlined_call_operand.vmem [shape: bf16[120,84], index: 11, kind: input, shape index: {}]
  %s12 = inlined_call_operand.vmem [shape: f32[1,84], index: 12, kind: input, shape index: {}]
  %s13 = inlined_call_operand.vmem [shape: bf16[84,128], index: 13, kind: input, shape index: {}]
  %s14 = inlined_call_operand.vmem [shape: f32[1,128], index: 14, kind: input, shape index: {}]
  %s15 = inlined_call_operand.vmem [shape: f32[2,8,128], index: 15, kind: output, shape index: {}]
  %s16 = sld [smem:[#allocation0]]
  $region93: #{lenet5_forward.1} parent=0
    _
  %s18 = ssub.s32 1, %s16
  %s19 = scalar_select 0, %s18, %s16
  loop: start=0, step=1, limit=4
  $region2: #{lenet5_forward.1} parent=0 // loop_pre_header
    _
  $region3: #{lenet5_forward.1} parent=0 // loop_header
    %s21 = sphi 0, %s25
    %p22 = scmp.ge.s32.totalorder %s21, 4
    %s31 = sphi 0, %s33
    %s34 = sphi 0, %s31
    %s35 = sphi 0, %s34
    %s51 = sphi 0, %s35
    %s55 = sphi 0, %s55
    %s57 = sphi 0, %s55
    %s58 = sphi 0, %s57
    %s72 = sphi 0, %s58
    %s76 = sphi 0, %s76
    %s78 = sphi 0, %s76
    %s79 = sphi 0, %s78
    %s93 = sphi 0, %s79
    %s97 = sphi 0, %s97
    %s99 = sphi 0, %s97
    %s100 = sphi 0, %s99
    %s114 = sphi 0, %s100
    %s118 = sphi 0, %s118
    %s120 = sphi 0, %s118
    %s121 = sphi 0, %s120
    %s135 = sphi 0, %s121
    %s139 = sphi 0, %s139
    %s141 = sphi 0, %s139
    %s142 = sphi 0, %s141
    %s156 = sphi 0, %s142
    %s160 = sphi 0, %s160
    %s162 = sphi 0, %s160
    %s163 = sphi 0, %s162
    %s177 = sphi 0, %s163
    %s181 = sphi 0, %s181
    %s183 = sphi 0, %s181
    %s184 = sphi 0, %s183
    %s198 = sphi 0, %s184
    %s202 = sphi 0, %s202
    %s204 = sphi 0, %s202
    %s205 = sphi 0, %s204
    %s219 = sphi 0, %s205
    %s223 = sphi 0, %s223
    %s225 = sphi 0, %s223
    %s226 = sphi 0, %s225
    %s240 = sphi 0, %s226
    %s244 = sphi 0, %s244
    %s246 = sphi 0, %s244
    %s247 = sphi 0, %s246
    %s261 = sphi 0, %s247
    %s265 = sphi 0, %s265
    %s267 = sphi 0, %s265
    %s268 = sphi 0, %s267
    %s282 = sphi 0, %s268
    %s286 = sphi 0, %s286
    %s288 = sphi 0, %s286
    %s289 = sphi 0, %s288
    %s303 = sphi 0, %s289
    %s307 = sphi 0, %s307
    %s309 = sphi 0, %s307
    %s310 = sphi 0, %s309
    %s324 = sphi 0, %s310
    %s328 = sphi 0, %s328
    %s330 = sphi 0, %s328
    %s331 = sphi 0, %s330
    %s345 = sphi 0, %s331
    %s351 = sphi 0, %s353
    %s354 = sphi 0, %s351
    %s355 = sphi 0, %s354
    %s371 = sphi 0, %s355
  $region4: #{lenet5_forward.1} parent=0 // loop_header_branch
    %24 = sbr.rel (%p22) target = $region8
  $region5: #{lenet5_forward.1} parent=0 // loop_body
    %s26 = ssub.s32 %s21, 1
    %s27 = ssub.s32 %s21, 2
    %s28 = sadd.s32 %s21, 1
    %s29 = ssub.s32 %s21, %s28
    %p30 = scmp.eq.s32.totalorder %s29, 0
    %s32 = sadd.s32 %s31, 1
    %s33 = scalar_select %p30, %s31, %s32
    %p36 = pneg %p30
    %p37 = scmp.eq.s32.totalorder %s21, 1
    %p38 = por %p36, %p37
    %p39 = scmp.ne.s32.totalorder %s31, %s34
    %p40 = scmp.eq.s32.totalorder %s21, 0
    %p41 = por %p39, %p40
    %p42 = scmp.ne.s32.totalorder %s31, %s34
    %p43 = scmp.eq.s32.totalorder %s26, 1
    %p44 = por %p42, %p43
    %p45 = scmp.ne.s32.totalorder %s34, %s35
    %p46 = scmp.eq.s32.totalorder %s26, 0
    %p47 = por %p45, %p46
    %p48 = scmp.ne.s32.totalorder %s34, %s35
    %p49 = scmp.eq.s32.totalorder %s27, 1
    %p50 = por %p48, %p49
    %p52 = scmp.ne.s32.totalorder %s35, %s51
    %p53 = scmp.eq.s32.totalorder %s27, 0
    %p54 = por %p52, %p53
    %s56 = sadd.s32 %s55, 1
    %p59 = scmp.eq.s32.totalorder %s21, 1
    %p60 = scmp.ne.s32.totalorder %s55, %s57
    %p61 = scmp.eq.s32.totalorder %s21, 0
    %p62 = por %p60, %p61
    %p63 = scmp.ne.s32.totalorder %s55, %s57
    %p64 = scmp.eq.s32.totalorder %s26, 1
    %p65 = por %p63, %p64
    %p66 = scmp.ne.s32.totalorder %s57, %s58
    %p67 = scmp.eq.s32.totalorder %s26, 0
    %p68 = por %p66, %p67
    %p69 = scmp.ne.s32.totalorder %s57, %s58
    %p70 = scmp.eq.s32.totalorder %s27, 1
    %p71 = por %p69, %p70
    %p73 = scmp.ne.s32.totalorder %s58, %s72
    %p74 = scmp.eq.s32.totalorder %s27, 0
    %p75 = por %p73, %p74
    %s77 = sadd.s32 %s76, 1
    %p80 = scmp.eq.s32.totalorder %s21, 1
    %p81 = scmp.ne.s32.totalorder %s76, %s78
    %p82 = scmp.eq.s32.totalorder %s21, 0
    %p83 = por %p81, %p82
    %p84 = scmp.ne.s32.totalorder %s76, %s78
    %p85 = scmp.eq.s32.totalorder %s26, 1
    %p86 = por %p84, %p85
    %p87 = scmp.ne.s32.totalorder %s78, %s79
    %p88 = scmp.eq.s32.totalorder %s26, 0
    %p89 = por %p87, %p88
    %p90 = scmp.ne.s32.totalorder %s78, %s79
    %p91 = scmp.eq.s32.totalorder %s27, 1
    %p92 = por %p90, %p91
    %p94 = scmp.ne.s32.totalorder %s79, %s93
    %p95 = scmp.eq.s32.totalorder %s27, 0
    %p96 = por %p94, %p95
    %s98 = sadd.s32 %s97, 1
    %p101 = scmp.eq.s32.totalorder %s21, 1
    %p102 = scmp.ne.s32.totalorder %s97, %s99
    %p103 = scmp.eq.s32.totalorder %s21, 0
    %p104 = por %p102, %p103
    %p105 = scmp.ne.s32.totalorder %s97, %s99
    %p106 = scmp.eq.s32.totalorder %s26, 1
    %p107 = por %p105, %p106
    %p108 = scmp.ne.s32.totalorder %s99, %s100
    %p109 = scmp.eq.s32.totalorder %s26, 0
    %p110 = por %p108, %p109
    %p111 = scmp.ne.s32.totalorder %s99, %s100
    %p112 = scmp.eq.s32.totalorder %s27, 1
    %p113 = por %p111, %p112
    %p115 = scmp.ne.s32.totalorder %s100, %s114
    %p116 = scmp.eq.s32.totalorder %s27, 0
    %p117 = por %p115, %p116
    %s119 = sadd.s32 %s118, 1
    %p122 = scmp.eq.s32.totalorder %s21, 1
    %p123 = scmp.ne.s32.totalorder %s118, %s120
    %p124 = scmp.eq.s32.totalorder %s21, 0
    %p125 = por %p123, %p124
    %p126 = scmp.ne.s32.totalorder %s118, %s120
    %p127 = scmp.eq.s32.totalorder %s26, 1
    %p128 = por %p126, %p127
    %p129 = scmp.ne.s32.totalorder %s120, %s121
    %p130 = scmp.eq.s32.totalorder %s26, 0
    %p131 = por %p129, %p130
    %p132 = scmp.ne.s32.totalorder %s120, %s121
    %p133 = scmp.eq.s32.totalorder %s27, 1
    %p134 = por %p132, %p133
    %p136 = scmp.ne.s32.totalorder %s121, %s135
    %p137 = scmp.eq.s32.totalorder %s27, 0
    %p138 = por %p136, %p137
    %s140 = sadd.s32 %s139, 1
    %p143 = scmp.eq.s32.totalorder %s21, 1
    %p144 = scmp.ne.s32.totalorder %s139, %s141
    %p145 = scmp.eq.s32.totalorder %s21, 0
    %p146 = por %p144, %p145
    %p147 = scmp.ne.s32.totalorder %s139, %s141
    %p148 = scmp.eq.s32.totalorder %s26, 1
    %p149 = por %p147, %p148
    %p150 = scmp.ne.s32.totalorder %s141, %s142
    %p151 = scmp.eq.s32.totalorder %s26, 0
    %p152 = por %p150, %p151
    %p153 = scmp.ne.s32.totalorder %s141, %s142
    %p154 = scmp.eq.s32.totalorder %s27, 1
    %p155 = por %p153, %p154
    %p157 = scmp.ne.s32.totalorder %s142, %s156
    %p158 = scmp.eq.s32.totalorder %s27, 0
    %p159 = por %p157, %p158
    %s161 = sadd.s32 %s160, 1
    %p164 = scmp.eq.s32.totalorder %s21, 1
    %p165 = scmp.ne.s32.totalorder %s160, %s162
    %p166 = scmp.eq.s32.totalorder %s21, 0
    %p167 = por %p165, %p166
    %p168 = scmp.ne.s32.totalorder %s160, %s162
    %p169 = scmp.eq.s32.totalorder %s26, 1
    %p170 = por %p168, %p169
    %p171 = scmp.ne.s32.totalorder %s162, %s163
    %p172 = scmp.eq.s32.totalorder %s26, 0
    %p173 = por %p171, %p172
    %p174 = scmp.ne.s32.totalorder %s162, %s163
    %p175 = scmp.eq.s32.totalorder %s27, 1
    %p176 = por %p174, %p175
    %p178 = scmp.ne.s32.totalorder %s163, %s177
    %p179 = scmp.eq.s32.totalorder %s27, 0
    %p180 = por %p178, %p179
    %s182 = sadd.s32 %s181, 1
    %p185 = scmp.eq.s32.totalorder %s21, 1
    %p186 = scmp.ne.s32.totalorder %s181, %s183
    %p187 = scmp.eq.s32.totalorder %s21, 0
    %p188 = por %p186, %p187
    %p189 = scmp.ne.s32.totalorder %s181, %s183
    %p190 = scmp.eq.s32.totalorder %s26, 1
    %p191 = por %p189, %p190
    %p192 = scmp.ne.s32.totalorder %s183, %s184
    %p193 = scmp.eq.s32.totalorder %s26, 0
    %p194 = por %p192, %p193
    %p195 = scmp.ne.s32.totalorder %s183, %s184
    %p196 = scmp.eq.s32.totalorder %s27, 1
    %p197 = por %p195, %p196
    %p199 = scmp.ne.s32.totalorder %s184, %s198
    %p200 = scmp.eq.s32.totalorder %s27, 0
    %p201 = por %p199, %p200
    %s203 = sadd.s32 %s202, 1
    %p206 = scmp.eq.s32.totalorder %s21, 1
    %p207 = scmp.ne.s32.totalorder %s202, %s204
    %p208 = scmp.eq.s32.totalorder %s21, 0
    %p209 = por %p207, %p208
    %p210 = scmp.ne.s32.totalorder %s202, %s204
    %p211 = scmp.eq.s32.totalorder %s26, 1
    %p212 = por %p210, %p211
    %p213 = scmp.ne.s32.totalorder %s204, %s205
    %p214 = scmp.eq.s32.totalorder %s26, 0
    %p215 = por %p213, %p214
    %p216 = scmp.ne.s32.totalorder %s204, %s205
    %p217 = scmp.eq.s32.totalorder %s27, 1
    %p218 = por %p216, %p217
    %p220 = scmp.ne.s32.totalorder %s205, %s219
    %p221 = scmp.eq.s32.totalorder %s27, 0
    %p222 = por %p220, %p221
    %s224 = sadd.s32 %s223, 1
    %p227 = scmp.eq.s32.totalorder %s21, 1
    %p228 = scmp.ne.s32.totalorder %s223, %s225
    %p229 = scmp.eq.s32.totalorder %s21, 0
    %p230 = por %p228, %p229
    %p231 = scmp.ne.s32.totalorder %s223, %s225
    %p232 = scmp.eq.s32.totalorder %s26, 1
    %p233 = por %p231, %p232
    %p234 = scmp.ne.s32.totalorder %s225, %s226
    %p235 = scmp.eq.s32.totalorder %s26, 0
    %p236 = por %p234, %p235
    %p237 = scmp.ne.s32.totalorder %s225, %s226
    %p238 = scmp.eq.s32.totalorder %s27, 1
    %p239 = por %p237, %p238
    %p241 = scmp.ne.s32.totalorder %s226, %s240
    %p242 = scmp.eq.s32.totalorder %s27, 0
    %p243 = por %p241, %p242
    %s245 = sadd.s32 %s244, 1
    %p248 = scmp.eq.s32.totalorder %s21, 1
    %p249 = scmp.ne.s32.totalorder %s244, %s246
    %p250 = scmp.eq.s32.totalorder %s21, 0
    %p251 = por %p249, %p250
    %p252 = scmp.ne.s32.totalorder %s244, %s246
    %p253 = scmp.eq.s32.totalorder %s26, 1
    %p254 = por %p252, %p253
    %p255 = scmp.ne.s32.totalorder %s246, %s247
    %p256 = scmp.eq.s32.totalorder %s26, 0
    %p257 = por %p255, %p256
    %p258 = scmp.ne.s32.totalorder %s246, %s247
    %p259 = scmp.eq.s32.totalorder %s27, 1
    %p260 = por %p258, %p259
    %p262 = scmp.ne.s32.totalorder %s247, %s261
    %p263 = scmp.eq.s32.totalorder %s27, 0
    %p264 = por %p262, %p263
    %s266 = sadd.s32 %s265, 1
    %p269 = scmp.eq.s32.totalorder %s21, 1
    %p270 = scmp.ne.s32.totalorder %s265, %s267
    %p271 = scmp.eq.s32.totalorder %s21, 0
    %p272 = por %p270, %p271
    %p273 = scmp.ne.s32.totalorder %s265, %s267
    %p274 = scmp.eq.s32.totalorder %s26, 1
    %p275 = por %p273, %p274
    %p276 = scmp.ne.s32.totalorder %s267, %s268
    %p277 = scmp.eq.s32.totalorder %s26, 0
    %p278 = por %p276, %p277
    %p279 = scmp.ne.s32.totalorder %s267, %s268
    %p280 = scmp.eq.s32.totalorder %s27, 1
    %p281 = por %p279, %p280
    %p283 = scmp.ne.s32.totalorder %s268, %s282
    %p284 = scmp.eq.s32.totalorder %s27, 0
    %p285 = por %p283, %p284
    %s287 = sadd.s32 %s286, 1
    %p290 = scmp.eq.s32.totalorder %s21, 1
    %p291 = scmp.ne.s32.totalorder %s286, %s288
    %p292 = scmp.eq.s32.totalorder %s21, 0
    %p293 = por %p291, %p292
    %p294 = scmp.ne.s32.totalorder %s286, %s288
    %p295 = scmp.eq.s32.totalorder %s26, 1
    %p296 = por %p294, %p295
    %p297 = scmp.ne.s32.totalorder %s288, %s289
    %p298 = scmp.eq.s32.totalorder %s26, 0
    %p299 = por %p297, %p298
    %p300 = scmp.ne.s32.totalorder %s288, %s289
    %p301 = scmp.eq.s32.totalorder %s27, 1
    %p302 = por %p300, %p301
    %p304 = scmp.ne.s32.totalorder %s289, %s303
    %p305 = scmp.eq.s32.totalorder %s27, 0
    %p306 = por %p304, %p305
    %s308 = sadd.s32 %s307, 1
    %p311 = scmp.eq.s32.totalorder %s21, 1
    %p312 = scmp.ne.s32.totalorder %s307, %s309
    %p313 = scmp.eq.s32.totalorder %s21, 0
    %p314 = por %p312, %p313
    %p315 = scmp.ne.s32.totalorder %s307, %s309
    %p316 = scmp.eq.s32.totalorder %s26, 1
    %p317 = por %p315, %p316
    %p318 = scmp.ne.s32.totalorder %s309, %s310
    %p319 = scmp.eq.s32.totalorder %s26, 0
    %p320 = por %p318, %p319
    %p321 = scmp.ne.s32.totalorder %s309, %s310
    %p322 = scmp.eq.s32.totalorder %s27, 1
    %p323 = por %p321, %p322
    %p325 = scmp.ne.s32.totalorder %s310, %s324
    %p326 = scmp.eq.s32.totalorder %s27, 0
    %p327 = por %p325, %p326
    %s329 = sadd.s32 %s328, 1
    %p332 = scmp.eq.s32.totalorder %s21, 1
    %p333 = scmp.ne.s32.totalorder %s328, %s330
    %p334 = scmp.eq.s32.totalorder %s21, 0
    %p335 = por %p333, %p334
    %p336 = scmp.ne.s32.totalorder %s328, %s330
    %p337 = scmp.eq.s32.totalorder %s26, 1
    %p338 = por %p336, %p337
    %p339 = scmp.ne.s32.totalorder %s330, %s331
    %p340 = scmp.eq.s32.totalorder %s26, 0
    %p341 = por %p339, %p340
    %p342 = scmp.ne.s32.totalorder %s330, %s331
    %p343 = scmp.eq.s32.totalorder %s27, 1
    %p344 = por %p342, %p343
    %p346 = scmp.ne.s32.totalorder %s331, %s345
    %p347 = scmp.eq.s32.totalorder %s27, 0
    %p348 = por %p346, %p347
    %s349 = ssub.s32 %s21, %s28
    %p350 = scmp.eq.s32.totalorder %s349, 0
    %s352 = sadd.s32 %s351, 1
    %s353 = scalar_select %p350, %s351, %s352
    %p356 = pneg %p350
    %p357 = scmp.eq.s32.totalorder %s21, 1
    %p358 = por %p356, %p357
    %p359 = scmp.ne.s32.totalorder %s351, %s354
    %p360 = scmp.eq.s32.totalorder %s21, 0
    %p361 = por %p359, %p360
    %p362 = scmp.ne.s32.totalorder %s351, %s354
    %p363 = scmp.eq.s32.totalorder %s26, 1
    %p364 = por %p362, %p363
    %p365 = scmp.ne.s32.totalorder %s354, %s355
    %p366 = scmp.eq.s32.totalorder %s26, 0
    %p367 = por %p365, %p366
    %p368 = scmp.ne.s32.totalorder %s354, %s355
    %p369 = scmp.eq.s32.totalorder %s27, 1
    %p370 = por %p368, %p369
    %p372 = scmp.ne.s32.totalorder %s355, %s371
    %p373 = scmp.eq.s32.totalorder %s27, 0
    %p374 = por %p372, %p373
    %p375 = scmp.le.s32.totalorder 1, %s21
    %p376 = scmp.lt.s32.totalorder %s21, 3
    %p377 = pnand %p375, %p376
    %p378 = pneg %p377
    // Predicated region
    $region9: #{lenet5_forward.1} parent=5 // pred_check
      _
    $region10: #{lenet5_forward.1} parent=5 // pred_check_branch
      %380 = sbr.rel (%p377) target = $region12
    $region11: #{lenet5_forward.1} parent=5 // pred_region
      %s381 = ssub.s32 %s21, 1
      // Predicated region
      $region13: #{lenet5_forward.1} parent=11 // pred_check
        %p382 = pneg %p68
      $region14: #{lenet5_forward.1} parent=11 // pred_check_branch
        %384 = sbr.rel (%p382) target = $region16
      $region15: #{lenet5_forward.1} parent=11 // pred_region
        _
      $region16: #{lenet5_forward.1} parent=11 // pred_fallthru
        _
      // Predicated region
      $region17: #{lenet5_forward.1} parent=11 // pred_check
        %p385 = pneg %p89
      $region18: #{lenet5_forward.1} parent=11 // pred_check_branch
        %387 = sbr.rel (%p385) target = $region20
      $region19: #{lenet5_forward.1} parent=11 // pred_region
        _
      $region20: #{lenet5_forward.1} parent=11 // pred_fallthru
        _
      // Predicated region
      $region21: #{lenet5_forward.1} parent=11 // pred_check
        %p388 = pneg %p110
      $region22: #{lenet5_forward.1} parent=11 // pred_check_branch
        %390 = sbr.rel (%p388) target = $region24
      $region23: #{lenet5_forward.1} parent=11 // pred_region
        _
      $region24: #{lenet5_forward.1} parent=11 // pred_fallthru
        _
      // Predicated region
      $region25: #{lenet5_forward.1} parent=11 // pred_check
        %p391 = pneg %p131
      $region26: #{lenet5_forward.1} parent=11 // pred_check_branch
        %393 = sbr.rel (%p391) target = $region28
      $region27: #{lenet5_forward.1} parent=11 // pred_region
        _
      $region28: #{lenet5_forward.1} parent=11 // pred_fallthru
        _
      // Predicated region
      $region29: #{lenet5_forward.1} parent=11 // pred_check
        %p394 = pneg %p152
      $region30: #{lenet5_forward.1} parent=11 // pred_check_branch
        %396 = sbr.rel (%p394) target = $region32
      $region31: #{lenet5_forward.1} parent=11 // pred_region
        _
      $region32: #{lenet5_forward.1} parent=11 // pred_fallthru
        _
      // Predicated region
      $region33: #{lenet5_forward.1} parent=11 // pred_check
        %p397 = pneg %p173
      $region34: #{lenet5_forward.1} parent=11 // pred_check_branch
        %399 = sbr.rel (%p397) target = $region36
      $region35: #{lenet5_forward.1} parent=11 // pred_region
        _
      $region36: #{lenet5_forward.1} parent=11 // pred_fallthru
        _
      // Predicated region
      $region37: #{lenet5_forward.1} parent=11 // pred_check
        %p400 = pneg %p194
      $region38: #{lenet5_forward.1} parent=11 // pred_check_branch
        %402 = sbr.rel (%p400) target = $region40
      $region39: #{lenet5_forward.1} parent=11 // pred_region
        _
      $region40: #{lenet5_forward.1} parent=11 // pred_fallthru
        _
      // Predicated region
      $region41: #{lenet5_forward.1} parent=11 // pred_check
        %p403 = pneg %p215
      $region42: #{lenet5_forward.1} parent=11 // pred_check_branch
        %405 = sbr.rel (%p403) target = $region44
      $region43: #{lenet5_forward.1} parent=11 // pred_region
        _
      $region44: #{lenet5_forward.1} parent=11 // pred_fallthru
        _
      // Predicated region
      $region45: #{lenet5_forward.1} parent=11 // pred_check
        %p406 = pneg %p236
      $region46: #{lenet5_forward.1} parent=11 // pred_check_branch
        %408 = sbr.rel (%p406) target = $region48
      $region47: #{lenet5_forward.1} parent=11 // pred_region
        _
      $region48: #{lenet5_forward.1} parent=11 // pred_fallthru
        _
      // Predicated region
      $region49: #{lenet5_forward.1} parent=11 // pred_check
        %p409 = pneg %p257
      $region50: #{lenet5_forward.1} parent=11 // pred_check_branch
        %411 = sbr.rel (%p409) target = $region52
      $region51: #{lenet5_forward.1} parent=11 // pred_region
        _
      $region52: #{lenet5_forward.1} parent=11 // pred_fallthru
        _
      // Predicated region
      $region53: #{lenet5_forward.1} parent=11 // pred_check
        %p412 = pneg %p278
      $region54: #{lenet5_forward.1} parent=11 // pred_check_branch
        %414 = sbr.rel (%p412) target = $region56
      $region55: #{lenet5_forward.1} parent=11 // pred_region
        _
      $region56: #{lenet5_forward.1} parent=11 // pred_fallthru
        _
      // Predicated region
      $region57: #{lenet5_forward.1} parent=11 // pred_check
        %p415 = pneg %p299
      $region58: #{lenet5_forward.1} parent=11 // pred_check_branch
        %417 = sbr.rel (%p415) target = $region60
      $region59: #{lenet5_forward.1} parent=11 // pred_region
        _
      $region60: #{lenet5_forward.1} parent=11 // pred_fallthru
        _
      // Predicated region
      $region61: #{lenet5_forward.1} parent=11 // pred_check
        %p418 = pneg %p320
      $region62: #{lenet5_forward.1} parent=11 // pred_check_branch
        %420 = sbr.rel (%p418) target = $region64
      $region63: #{lenet5_forward.1} parent=11 // pred_region
        _
      $region64: #{lenet5_forward.1} parent=11 // pred_fallthru
        _
      // Predicated region
      $region65: #{lenet5_forward.1} parent=11 // pred_check
        %p421 = pneg %p341
      $region66: #{lenet5_forward.1} parent=11 // pred_check_branch
        %423 = sbr.rel (%p421) target = $region68
      $region67: #{lenet5_forward.1} parent=11 // pred_region
        _
      $region68: #{lenet5_forward.1} parent=11 // pred_fallthru
        _
    $region12: #{lenet5_forward.1} parent=5 // pred_fallthru
      _
    %p424 = scmp.lt.s32.totalorder %s21, 2
    // Predicated region
    $region69: #{lenet5_forward.1} parent=5 // pred_check
      %p425 = pneg %p424
    $region70: #{lenet5_forward.1} parent=5 // pred_check_branch
      %427 = sbr.rel (%p425) target = $region72
    $region71: #{lenet5_forward.1} parent=5 // pred_region
      // Predicated region
      $region73: #{lenet5_forward.1} parent=71 // pred_check
        %p428 = pneg %p41
      $region74: #{lenet5_forward.1} parent=71 // pred_check_branch
        %430 = sbr.rel (%p428) target = $region76
      $region75: #{lenet5_forward.1} parent=71 // pred_region
        %p431 = scmp.lt.s32.totalorder %s21, 1
        %s432 = scalar_select %p431, %s21, 1
        %s433 = smul.addr %s432, 4
        %s434 = smul.addr %s433, 8
        %s435 = scalar_lea.vmem %s0, %s434
      $region76: #{lenet5_forward.1} parent=71 // pred_fallthru
        _
    $region72: #{lenet5_forward.1} parent=5 // pred_fallthru
      _
    %p436 = scmp.le.s32.totalorder 1, %s21
    %p437 = scmp.lt.s32.totalorder %s21, 3
    %p438 = pnand %p436, %p437
    %p439 = pneg %p438
    // Predicated region
    $region77: #{lenet5_forward.1} parent=5 // pred_check
      _
    $region78: #{lenet5_forward.1} parent=5 // pred_check_branch
      %441 = sbr.rel (%p438) target = $region80
    $region79: #{lenet5_forward.1} parent=5 // pred_region
      %s442 = ssub.s32 %s21, 1
      %p443 = scmp.lt.s32.totalorder %s26, 1
      %s444 = scalar_select %p443, %s26, 1
      %s445 = smul.addr %s444, 4
      %s446 = smul.addr %s445, 8
      %s447 = scalar_lea.vmem %s0, %s446
      %p448 = pneg %p47
      %p449 = pneg %p44
      %p450 = pneg %p68
      %p451 = pneg %p65
      %p452 = pneg %p89
      %p453 = pneg %p86
      %p454 = pneg %p110
      %p455 = pneg %p107
      %p456 = pneg %p131
      %p457 = pneg %p128
      %p458 = pneg %p152
      %p459 = pneg %p149
      %p460 = pneg %p173
      %p461 = pneg %p170
      %p462 = pneg %p194
      %p463 = pneg %p191
      %p464 = pneg %p215
      %p465 = pneg %p212
      %p466 = pneg %p236
      %p467 = pneg %p233
      %p468 = pneg %p257
      %p469 = pneg %p254
      %p470 = pneg %p278
      %p471 = pneg %p275
      %p472 = pneg %p299
      %p473 = pneg %p296
      %p474 = pneg %p320
      %p475 = pneg %p317
      %p476 = pneg %p341
      %p477 = pneg %p338
      %p478 = pneg %p367
      %p479 = pneg %p364
      %p480 = scmp.lt.s32.totalorder %s26, 1
      %s481 = scalar_select %p480, %s26, 1
      %s482 = smul.addr %s481, 8
      %s483 = scalar_lea.vmem %s15, %s482
      %p484 = scmp.lt.s32.totalorder %s26, 1
      %s485 = scalar_select %p484, %s26, 1
      %s486 = smul.addr %s485, 4
      %s487 = smul.addr %s486, 8
      %s488 = scalar_lea.vmem %s0, %s487
      %p489 = scmp.lt.s32.totalorder %s26, 1
      %s490 = scalar_select %p489, %s26, 1
      %s491 = smul.addr %s490, 8
      %s492 = scalar_lea.vmem %s15, %s491
      %v494 = vld [vmem:[%s488] sm:$0xff]
      %v495 = vld [vmem:[%s488 + $0x8] sm:$0xff]
      %v496 = vld [vmem:[%s488 + $0x10] sm:$0xff]
      %v497 = vld [vmem:[%s488 + $0x18] sm:$0xf]
      %v498 = vpack.c.bf16 %v495, %v494
      %v499 = vpack.c.bf16 %v497, %v496
      %v500 = vld [vmem:[%s1] sm:$0xff]
      %v501 = vld [vmem:[%s1 + $0x8] sm:$0xff]
      %v502 = vld [vmem:[%s1 + $0x10] sm:$0xff]
      %v503 = vld [vmem:[%s1 + $0x18] sm:$0xff]
      %v504 = vld [vmem:[%s488 + $0x1] sm:$0xff]
      %v505 = vld [vmem:[%s488 + $0x9] sm:$0xff]
      %v506 = vld [vmem:[%s488 + $0x11] sm:$0xff]
      %v507 = vld [vmem:[%s488 + $0x19] sm:$0xf]
      %v508 = vpack.c.bf16 %v505, %v504
      %v509 = vpack.c.bf16 %v507, %v506
      %s510 = scalar_lea.vmem %s1, 32
      %v511 = vld [vmem:[%s510] sm:$0xff]
      %v512 = vld [vmem:[%s510 + $0x8] sm:$0xff]
      %v513 = vld [vmem:[%s510 + $0x10] sm:$0xff]
      %v514 = vld [vmem:[%s510 + $0x18] sm:$0xff]
      %v519 = vunpack.c.l.b16 %v511
      %v520 = vunpack.c.h.b16 %v511
      %v521 = vunpack.c.l.b16 %v512
      %v522 = vunpack.c.h.b16 %v512
      %v523 = vunpack.c.l.b16 %v513
      %v524 = vunpack.c.h.b16 %v513
      %v525 = vunpack.c.l.b16 %v514
      %v526 = vunpack.c.h.b16 %v514
      %v527 = vpack.c.b16 %v521, %v519
      %v528 = vpack.c.b16 %v522, %v520
      %v529 = vpack.c.b16 %v525, %v523
      %v530 = vpack.c.b16 %v526, %v524
      %vm535 = vcmask 261120
      %v537 = vsel %vm535, %v508, 0
      %v540 = vsel %vm535, %v509, 0
      %542 = vmatprep.subr.bf16.mxu0 0
      %543 = vmatpush1.bf16.msra.mxu0 0
      %544 = vmatprep.subr.bf16.mxu0 0
      %545 = vmatpush1.bf16.msra.mxu0 0
      %546 = vmatprep.subr.bf16.mxu0 0
      %547 = vmatpush1.bf16.msra.mxu0 0
      %548 = vmatprep.subr.bf16.mxu0 0
      %549 = vmatpush1.bf16.msra.mxu0 0
      %550 = vmatprep.subr.bf16.mxu0 0
      %551 = vmatpush1.bf16.msra.mxu0 0
      %552 = vmatprep.subr.bf16.mxu0 0
      %553 = vmatpush1.bf16.msra.mxu0 0
      %554 = vmatprep.subr.bf16.mxu0 %v530
      %555 = vmatpush1.bf16.msra.mxu0 %v529
      %556 = vmatprep.subr.bf16.mxu0 %v528
      %557 = vmatpush1.bf16.msra.mxu0 %v527
      %558 = vmatprep.subr.bf16.mxu0 0
      %559 = vmatpush2.bf16.msra.mxu0 0
      %560 = vmatprep.subr.bf16.mxu0 0
      %561 = vmatpush2.bf16.msra.mxu0 0
      %562 = vmatprep.subr.bf16.mxu0 0
      %563 = vmatpush2.bf16.msra.mxu0 0
      %564 = vmatprep.subr.bf16.mxu0 0
      %565 = vmatpush2.bf16.msra.mxu0 0
      %566 = vmatprep.subr.bf16.mxu0 0
      %567 = vmatpush2.bf16.msra.mxu0 0
      %568 = vmatprep.subr.bf16.mxu0 0
      %569 = vmatpush2.bf16.msra.mxu0 0
      %570 = vmatprep.subr.bf16.mxu0 0
      %571 = vmatpush2.bf16.msra.mxu0 0
      %572 = vmatprep.subr.bf16.mxu0 0
      %573 = vmatpush2.bf16.msra.mxu0 0
      %574 = vmatprep.mubr.bf16.mxu0 0
      %575 = vmatmul.mubr.bf16.gmra.mxu0 %v537
      %v576 = vpop.f32.mrf.mxu0
      %v577 = vadd.f32 0.0, %v576
      %v578 = vpop.f32.mrf.mxu0
      %v579 = vadd.f32 0.0, %v578
      %v580 = vpop.f32.mrf.mxu0
      %v581 = vadd.f32 0.0, %v580
      %v582 = vpop.f32.mrf.mxu0
      %v583 = vadd.f32 0.0, %v582
      %584 = vmatprep.mubr.bf16.mxu0 0
      %585 = vmatmul.mubr.bf16.gmra.mxu0 %v540
      %v586 = vpop.f32.mrf.mxu0
      %v587 = vadd.f32 0.0, %v586
      %v588 = vpop.f32.mrf.mxu0
      %v589 = vadd.f32 0.0, %v588
      %v590 = vpop.f32.mrf.mxu0
      %v591 = vadd.f32 0.0, %v590
      %v592 = vpop.f32.mrf.mxu0
      %v593 = vadd.f32 0.0, %v592
      %594 = vdwg.mxu0
      %v599 = vunpack.c.l.b16 %v500
      %v600 = vunpack.c.h.b16 %v500
      %v601 = vunpack.c.l.b16 %v501
      %v602 = vunpack.c.h.b16 %v501
      %v603 = vunpack.c.l.b16 %v502
      %v604 = vunpack.c.h.b16 %v502
      %v605 = vunpack.c.l.b16 %v503
      %v606 = vunpack.c.h.b16 %v503
      %v607 = vpack.c.b16 %v601, %v599
      %v608 = vpack.c.b16 %v602, %v600
      %v609 = vpack.c.b16 %v605, %v603
      %v610 = vpack.c.b16 %v606, %v604
      %v616 = vsel %vm535, %v498, 0
      %v619 = vsel %vm535, %v499, 0
      %621 = vmatprep.subr.bf16.mxu0 0
      %622 = vmatpush1.bf16.msra.mxu0 0
      %623 = vmatprep.subr.bf16.mxu0 0
      %624 = vmatpush1.bf16.msra.mxu0 0
      %625 = vmatprep.subr.bf16.mxu0 0
      %626 = vmatpush1.bf16.msra.mxu0 0
      %627 = vmatprep.subr.bf16.mxu0 0
      %628 = vmatpush1.bf16.msra.mxu0 0
      %629 = vmatprep.subr.bf16.mxu0 0
      %630 = vmatpush1.bf16.msra.mxu0 0
      %631 = vmatprep.subr.bf16.mxu0 0
      %632 = vmatpush1.bf16.msra.mxu0 0
      %633 = vmatprep.subr.bf16.mxu0 %v610
      %634 = vmatpush1.bf16.msra.mxu0 %v609
      %635 = vmatprep.subr.bf16.mxu0 %v608
      %636 = vmatpush1.bf16.msra.mxu0 %v607
      %637 = vmatprep.subr.bf16.mxu0 0
      %638 = vmatpush2.bf16.msra.mxu0 0
      %639 = vmatprep.subr.bf16.mxu0 0
      %640 = vmatpush2.bf16.msra.mxu0 0
      %641 = vmatprep.subr.bf16.mxu0 0
      %642 = vmatpush2.bf16.msra.mxu0 0
      %643 = vmatprep.subr.bf16.mxu0 0
      %644 = vmatpush2.bf16.msra.mxu0 0
      %645 = vmatprep.subr.bf16.mxu0 0
      %646 = vmatpush2.bf16.msra.mxu0 0
      %647 = vmatprep.subr.bf16.mxu0 0
      %648 = vmatpush2.bf16.msra.mxu0 0
      %649 = vmatprep.subr.bf16.mxu0 0
      %650 = vmatpush2.bf16.msra.mxu0 0
      %651 = vmatprep.subr.bf16.mxu0 0
      %652 = vmatpush2.bf16.msra.mxu0 0
      %653 = vmatprep.mubr.bf16.mxu0 0
      %654 = vmatmul.mubr.bf16.gmra.mxu0 %v616
      %v655 = vpop.f32.mrf.mxu0
      %v656 = vadd.f32 %v577, %v655
      %v657 = vpop.f32.mrf.mxu0
      %v658 = vadd.f32 %v579, %v657
      %v659 = vpop.f32.mrf.mxu0
      %v660 = vadd.f32 %v581, %v659
      %v661 = vpop.f32.mrf.mxu0
      %v662 = vadd.f32 %v583, %v661
      %663 = vmatprep.mubr.bf16.mxu0 0
      %664 = vmatmul.mubr.bf16.gmra.mxu0 %v619
      %v665 = vpop.f32.mrf.mxu0
      %v666 = vadd.f32 %v587, %v665
      %v667 = vpop.f32.mrf.mxu0
      %v668 = vadd.f32 %v589, %v667
      %v669 = vpop.f32.mrf.mxu0
      %v670 = vadd.f32 %v591, %v669
      %v671 = vpop.f32.mrf.mxu0
      %v672 = vadd.f32 %v593, %v671
      %673 = vdwg.mxu0
      %v674 = vld [vmem:[%s488 + $0x2] sm:$0xff]
      %v675 = vld [vmem:[%s488 + $0xa] sm:$0xff]
      %v676 = vld [vmem:[%s488 + $0x12] sm:$0xff]
      %v677 = vld [vmem:[%s488 + $0x1a] sm:$0xf]
      %v678 = vpack.c.bf16 %v675, %v674
      %v679 = vpack.c.bf16 %v677, %v676
      %s680 = scalar_lea.vmem %s1, 64
      %v681 = vld [vmem:[%s680] sm:$0xff]
      %v682 = vld [vmem:[%s680 + $0x8] sm:$0xff]
      %v683 = vld [vmem:[%s680 + $0x10] sm:$0xff]
      %v684 = vld [vmem:[%s680 + $0x18] sm:$0xff]
      %v689 = vunpack.c.l.b16 %v681
      %v690 = vunpack.c.h.b16 %v681
      %v691 = vunpack.c.l.b16 %v682
      %v692 = vunpack.c.h.b16 %v682
      %v693 = vunpack.c.l.b16 %v683
      %v694 = vunpack.c.h.b16 %v683
      %v695 = vunpack.c.l.b16 %v684
      %v696 = vunpack.c.h.b16 %v684
      %v697 = vpack.c.b16 %v691, %v689
      %v698 = vpack.c.b16 %v692, %v690
      %v699 = vpack.c.b16 %v695, %v693
      %v700 = vpack.c.b16 %v696, %v694
      %v706 = vsel %vm535, %v678, 0
      %v709 = vsel %vm535, %v679, 0
      %711 = vmatprep.subr.bf16.mxu0 0
      %712 = vmatpush1.bf16.msra.mxu0 0
      %713 = vmatprep.subr.bf16.mxu0 0
      %714 = vmatpush1.bf16.msra.mxu0 0
      %715 = vmatprep.subr.bf16.mxu0 0
      %716 = vmatpush1.bf16.msra.mxu0 0
      %717 = vmatprep.subr.bf16.mxu0 0
      %718 = vmatpush1.bf16.msra.mxu0 0
      %719 = vmatprep.subr.bf16.mxu0 0
      %720 = vmatpush1.bf16.msra.mxu0 0
      %721 = vmatprep.subr.bf16.mxu0 0
      %722 = vmatpush1.bf16.msra.mxu0 0
      %723 = vmatprep.subr.bf16.mxu0 %v700
      %724 = vmatpush1.bf16.msra.mxu0 %v699
      %725 = vmatprep.subr.bf16.mxu0 %v698
      %726 = vmatpush1.bf16.msra.mxu0 %v697
      %727 = vmatprep.subr.bf16.mxu0 0
      %728 = vmatpush2.bf16.msra.mxu0 0
      %729 = vmatprep.subr.bf16.mxu0 0
      %730 = vmatpush2.bf16.msra.mxu0 0
      %731 = vmatprep.subr.bf16.mxu0 0
      %732 = vmatpush2.bf16.msra.mxu0 0
      %733 = vmatprep.subr.bf16.mxu0 0
      %734 = vmatpush2.bf16.msra.mxu0 0
      %735 = vmatprep.subr.bf16.mxu0 0
      %736 = vmatpush2.bf16.msra.mxu0 0
      %737 = vmatprep.subr.bf16.mxu0 0
      %738 = vmatpush2.bf16.msra.mxu0 0
      %739 = vmatprep.subr.bf16.mxu0 0
      %740 = vmatpush2.bf16.msra.mxu0 0
      %741 = vmatprep.subr.bf16.mxu0 0
      %742 = vmatpush2.bf16.msra.mxu0 0
      %743 = vmatprep.mubr.bf16.mxu0 0
      %744 = vmatmul.mubr.bf16.gmra.mxu0 %v706
      %v745 = vpop.f32.mrf.mxu0
      %v746 = vadd.f32 0.0, %v745
      %v747 = vpop.f32.mrf.mxu0
      %v748 = vadd.f32 0.0, %v747
      %v749 = vpop.f32.mrf.mxu0
      %v750 = vadd.f32 0.0, %v749
      %v751 = vpop.f32.mrf.mxu0
      %v752 = vadd.f32 0.0, %v751
      %753 = vmatprep.mubr.bf16.mxu0 0
      %754 = vmatmul.mubr.bf16.gmra.mxu0 %v709
      %v755 = vpop.f32.mrf.mxu0
      %v756 = vadd.f32 0.0, %v755
      %v757 = vpop.f32.mrf.mxu0
      %v758 = vadd.f32 0.0, %v757
      %v759 = vpop.f32.mrf.mxu0
      %v760 = vadd.f32 0.0, %v759
      %v761 = vpop.f32.mrf.mxu0
      %v762 = vadd.f32 0.0, %v761
      %763 = vdwg.mxu0
      %v764 = vadd.f32 %v656, %v746
      %v765 = vadd.f32 %v658, %v748
      %v766 = vadd.f32 %v660, %v750
      %v767 = vadd.f32 %v662, %v752
      %v768 = vadd.f32 %v666, %v756
      %v769 = vadd.f32 %v668, %v758
      %v770 = vadd.f32 %v670, %v760
      %v771 = vadd.f32 %v672, %v762
      %v772 = vld [vmem:[%s488 + $0x3] sm:$0xff]
      %v773 = vld [vmem:[%s488 + $0xb] sm:$0xff]
      %v774 = vld [vmem:[%s488 + $0x13] sm:$0xff]
      %v775 = vld [vmem:[%s488 + $0x1b] sm:$0xf]
      %v776 = vpack.c.bf16 %v773, %v772
      %v777 = vpack.c.bf16 %v775, %v774
      %s778 = scalar_lea.vmem %s1, 96
      %v779 = vld [vmem:[%s778] sm:$0xff]
      %v780 = vld [vmem:[%s778 + $0x8] sm:$0xff]
      %v781 = vld [vmem:[%s778 + $0x10] sm:$0xff]
      %v782 = vld [vmem:[%s778 + $0x18] sm:$0xff]
      %v787 = vunpack.c.l.b16 %v779
      %v788 = vunpack.c.h.b16 %v779
      %v789 = vunpack.c.l.b16 %v780
      %v790 = vunpack.c.h.b16 %v780
      %v791 = vunpack.c.l.b16 %v781
      %v792 = vunpack.c.h.b16 %v781
      %v793 = vunpack.c.l.b16 %v782
      %v794 = vunpack.c.h.b16 %v782
      %v795 = vpack.c.b16 %v789, %v787
      %v796 = vpack.c.b16 %v790, %v788
      %v797 = vpack.c.b16 %v793, %v791
      %v798 = vpack.c.b16 %v794, %v792
      %v804 = vsel %vm535, %v776, 0
      %v807 = vsel %vm535, %v777, 0
      %809 = vmatprep.subr.bf16.mxu0 0
      %810 = vmatpush1.bf16.msra.mxu0 0
      %811 = vmatprep.subr.bf16.mxu0 0
      %812 = vmatpush1.bf16.msra.mxu0 0
      %813 = vmatprep.subr.bf16.mxu0 0
      %814 = vmatpush1.bf16.msra.mxu0 0
      %815 = vmatprep.subr.bf16.mxu0 0
      %816 = vmatpush1.bf16.msra.mxu0 0
      %817 = vmatprep.subr.bf16.mxu0 0
      %818 = vmatpush1.bf16.msra.mxu0 0
      %819 = vmatprep.subr.bf16.mxu0 0
      %820 = vmatpush1.bf16.msra.mxu0 0
      %821 = vmatprep.subr.bf16.mxu0 %v798
      %822 = vmatpush1.bf16.msra.mxu0 %v797
      %823 = vmatprep.subr.bf16.mxu0 %v796
      %824 = vmatpush1.bf16.msra.mxu0 %v795
      %825 = vmatprep.subr.bf16.mxu0 0
      %826 = vmatpush2.bf16.msra.mxu0 0
      %827 = vmatprep.subr.bf16.mxu0 0
      %828 = vmatpush2.bf16.msra.mxu0 0
      %829 = vmatprep.subr.bf16.mxu0 0
      %830 = vmatpush2.bf16.msra.mxu0 0
      %831 = vmatprep.subr.bf16.mxu0 0
      %832 = vmatpush2.bf16.msra.mxu0 0
      %833 = vmatprep.subr.bf16.mxu0 0
      %834 = vmatpush2.bf16.msra.mxu0 0
      %835 = vmatprep.subr.bf16.mxu0 0
      %836 = vmatpush2.bf16.msra.mxu0 0
      %837 = vmatprep.subr.bf16.mxu0 0
      %838 = vmatpush2.bf16.msra.mxu0 0
      %839 = vmatprep.subr.bf16.mxu0 0
      %840 = vmatpush2.bf16.msra.mxu0 0
      %841 = vmatprep.mubr.bf16.mxu0 0
      %842 = vmatmul.mubr.bf16.gmra.mxu0 %v804
      %v843 = vpop.f32.mrf.mxu0
      %v844 = vadd.f32 0.0, %v843
      %v845 = vpop.f32.mrf.mxu0
      %v846 = vadd.f32 0.0, %v845
      %v847 = vpop.f32.mrf.mxu0
      %v848 = vadd.f32 0.0, %v847
      %v849 = vpop.f32.mrf.mxu0
      %v850 = vadd.f32 0.0, %v849
      %851 = vmatprep.mubr.bf16.mxu0 0
      %852 = vmatmul.mubr.bf16.gmra.mxu0 %v807
      %v853 = vpop.f32.mrf.mxu0
      %v854 = vadd.f32 0.0, %v853
      %v855 = vpop.f32.mrf.mxu0
      %v856 = vadd.f32 0.0, %v855
      %v857 = vpop.f32.mrf.mxu0
      %v858 = vadd.f32 0.0, %v857
      %v859 = vpop.f32.mrf.mxu0
      %v860 = vadd.f32 0.0, %v859
      %861 = vdwg.mxu0
      %v862 = vadd.f32 %v764, %v844
      %v863 = vadd.f32 %v765, %v846
      %v864 = vadd.f32 %v766, %v848
      %v865 = vadd.f32 %v767, %v850
      %v866 = vadd.f32 %v768, %v854
      %v867 = vadd.f32 %v769, %v856
      %v868 = vadd.f32 %v770, %v858
      %v869 = vadd.f32 %v771, %v860
      %v870 = vld [vmem:[%s488 + $0x4] sm:$0xff]
      %v871 = vld [vmem:[%s488 + $0xc] sm:$0xff]
      %v872 = vld [vmem:[%s488 + $0x14] sm:$0xff]
      %v873 = vld [vmem:[%s488 + $0x1c] sm:$0xf]
      %v874 = vpack.c.bf16 %v871, %v870
      %v875 = vpack.c.bf16 %v873, %v872
      %s876 = scalar_lea.vmem %s1, 128
      %v877 = vld [vmem:[%s876] sm:$0xff]
      %v878 = vld [vmem:[%s876 + $0x8] sm:$0xff]
      %v879 = vld [vmem:[%s876 + $0x10] sm:$0xff]
      %v880 = vld [vmem:[%s876 + $0x18] sm:$0xff]
      %v885 = vunpack.c.l.b16 %v877
      %v886 = vunpack.c.h.b16 %v877
      %v887 = vunpack.c.l.b16 %v878
      %v888 = vunpack.c.h.b16 %v878
      %v889 = vunpack.c.l.b16 %v879
      %v890 = vunpack.c.h.b16 %v879
      %v891 = vunpack.c.l.b16 %v880
      %v892 = vunpack.c.h.b16 %v880
      %v893 = vpack.c.b16 %v887, %v885
      %v894 = vpack.c.b16 %v888, %v886
      %v895 = vpack.c.b16 %v891, %v889
      %v896 = vpack.c.b16 %v892, %v890
      %v902 = vsel %vm535, %v874, 0
      %v905 = vsel %vm535, %v875, 0
      %907 = vmatprep.subr.bf16.mxu0 0
      %908 = vmatpush1.bf16.msra.mxu0 0
      %909 = vmatprep.subr.bf16.mxu0 0
      %910 = vmatpush1.bf16.msra.mxu0 0
      %911 = vmatprep.subr.bf16.mxu0 0
      %912 = vmatpush1.bf16.msra.mxu0 0
      %913 = vmatprep.subr.bf16.mxu0 0
      %914 = vmatpush1.bf16.msra.mxu0 0
      %915 = vmatprep.subr.bf16.mxu0 0
      %916 = vmatpush1.bf16.msra.mxu0 0
      %917 = vmatprep.subr.bf16.mxu0 0
      %918 = vmatpush1.bf16.msra.mxu0 0
      %919 = vmatprep.subr.bf16.mxu0 %v896
      %920 = vmatpush1.bf16.msra.mxu0 %v895
      %921 = vmatprep.subr.bf16.mxu0 %v894
      %922 = vmatpush1.bf16.msra.mxu0 %v893
      %923 = vmatprep.subr.bf16.mxu0 0
      %924 = vmatpush2.bf16.msra.mxu0 0
      %925 = vmatprep.subr.bf16.mxu0 0
      %926 = vmatpush2.bf16.msra.mxu0 0
      %927 = vmatprep.subr.bf16.mxu0 0
      %928 = vmatpush2.bf16.msra.mxu0 0
      %929 = vmatprep.subr.bf16.mxu0 0
      %930 = vmatpush2.bf16.msra.mxu0 0
      %931 = vmatprep.subr.bf16.mxu0 0
      %932 = vmatpush2.bf16.msra.mxu0 0
      %933 = vmatprep.subr.bf16.mxu0 0
      %934 = vmatpush2.bf16.msra.mxu0 0
      %935 = vmatprep.subr.bf16.mxu0 0
      %936 = vmatpush2.bf16.msra.mxu0 0
      %937 = vmatprep.subr.bf16.mxu0 0
      %938 = vmatpush2.bf16.msra.mxu0 0
      %939 = vmatprep.mubr.bf16.mxu0 0
      %940 = vmatmul.mubr.bf16.gmra.mxu0 %v902
      %v941 = vpop.f32.mrf.mxu0
      %v942 = vadd.f32 0.0, %v941
      %v943 = vpop.f32.mrf.mxu0
      %v944 = vadd.f32 0.0, %v943
      %v945 = vpop.f32.mrf.mxu0
      %v946 = vadd.f32 0.0, %v945
      %v947 = vpop.f32.mrf.mxu0
      %v948 = vadd.f32 0.0, %v947
      %949 = vmatprep.mubr.bf16.mxu0 0
      %950 = vmatmul.mubr.bf16.gmra.mxu0 %v905
      %v951 = vpop.f32.mrf.mxu0
      %v952 = vadd.f32 0.0, %v951
      %v953 = vpop.f32.mrf.mxu0
      %v954 = vadd.f32 0.0, %v953
      %v955 = vpop.f32.mrf.mxu0
      %v956 = vadd.f32 0.0, %v955
      %v957 = vpop.f32.mrf.mxu0
      %v958 = vadd.f32 0.0, %v957
      %959 = vdwg.mxu0
      %v960 = vadd.f32 %v862, %v942
      %v961 = vadd.f32 %v863, %v944
      %v962 = vadd.f32 %v864, %v946
      %v963 = vadd.f32 %v865, %v948
      %v964 = vadd.f32 %v866, %v952
      %v965 = vadd.f32 %v867, %v954
      %v966 = vadd.f32 %v868, %v956
      %v967 = vadd.f32 %v869, %v958
      %v968 = vld [vmem:[%s2] sm:$0x3]
      %v970 = vlaneseq
      %v971 = vshrl.u32 %v970, 7
      %v972 = vsub.s32 0, %v971
      %v973 = vrot.slane %v968, %v972
      %v974 = vlaneseq
      %v975 = vshrl.u32 %v974, 7
      %v976 = vsub.s32 1, %v975
      %v977 = vrot.slane %v968, %v976
      %v980 = vadd.f32 %v960, %v973
      %v981 = vadd.f32 %v961, %v977
      %v982 = vadd.f32 %v962, %v973
      %v983 = vadd.f32 %v963, %v977
      %v984 = vadd.f32 %v964, %v973
      %v985 = vadd.f32 %v965, %v977
      %v986 = vadd.f32 %v966, %v973
      %v987 = vadd.f32 %v967, %v977
      %v988 = vtanh.pop %v980
      %v989 = vtanh.pop %v981
      %v990 = vtanh.pop %v982
      %v991 = vtanh.pop %v983
      %v992 = vtanh.pop %v984
      %v993 = vtanh.pop %v985
      %v994 = vtanh.pop %v986
      %v995 = vtanh.pop %v987
      %v996 = vmul.f32 %v988, 1.7159
      %v997 = vmul.f32 %v989, 1.7159
      %v998 = vmul.f32 %v990, 1.7159
      %v999 = vmul.f32 %v991, 1.7159
      %v1000 = vmul.f32 %v992, 1.7159
      %v1001 = vmul.f32 %v993, 1.7159
      %v1002 = vmul.f32 %v994, 1.7159
      %v1003 = vmul.f32 %v995, 1.7159
      %v1004 = vpack.c.bf16 %v998, %v996
      %v1005 = vpack.c.bf16 %v999, %v997
      %v1006 = vpack.c.bf16 %v1002, %v1000
      %v1007 = vpack.c.bf16 %v1003, %v1001
      %v1008 = vld [vmem:[%s3] sm:$0xf]
      %v1009 = vld [vmem:[%s3 + $0x4] sm:$0x7]
      %v1012 = vunpack.c.l.b16 %v1008
      %v1013 = vunpack.c.l.b16 %v1009
      %v1014 = vpack.c.b16 %v1013, %v1012
      %vm1015 = vcmask 228352
      %v1017 = vsel %vm1015, %v1014, 0
      %vm1019 = vcmask 1045504
      %v1021 = vsel %vm1019, %v1006, 0
      %v1024 = vsel %vm1019, %v1007, 0
      %1026 = vmatprep.subr.bf16.mxu0 0
      %1027 = vmatpush1.bf16.msra.mxu0 0
      %1028 = vmatprep.subr.bf16.mxu0 0
      %1029 = vmatpush1.bf16.msra.mxu0 0
      %1030 = vmatprep.subr.bf16.mxu0 0
      %1031 = vmatpush1.bf16.msra.mxu0 0
      %1032 = vmatprep.subr.bf16.mxu0 0
      %1033 = vmatpush1.bf16.msra.mxu0 0
      %1034 = vmatprep.subr.bf16.mxu0 0
      %1035 = vmatpush1.bf16.msra.mxu0 0
      %1036 = vmatprep.subr.bf16.mxu0 0
      %1037 = vmatpush1.bf16.msra.mxu0 0
      %1038 = vmatprep.subr.bf16.mxu0 %v1024
      %1039 = vmatpush1.bf16.msra.mxu0 %v1021
      %1040 = vmatprep.subr.bf16.mxu0 %v1005
      %1041 = vmatpush1.bf16.msra.mxu0 %v1004
      %1042 = vmatprep.subr.bf16.mxu0 0
      %1043 = vmatpush2.bf16.msra.mxu0 0
      %1044 = vmatprep.subr.bf16.mxu0 0
      %1045 = vmatpush2.bf16.msra.mxu0 0
      %1046 = vmatprep.subr.bf16.mxu0 0
      %1047 = vmatpush2.bf16.msra.mxu0 0
      %1048 = vmatprep.subr.bf16.mxu0 0
      %1049 = vmatpush2.bf16.msra.mxu0 0
      %1050 = vmatprep.subr.bf16.mxu0 0
      %1051 = vmatpush2.bf16.msra.mxu0 0
      %1052 = vmatprep.subr.bf16.mxu0 0
      %1053 = vmatpush2.bf16.msra.mxu0 0
      %1054 = vmatprep.subr.bf16.mxu0 0
      %1055 = vmatpush2.bf16.msra.mxu0 0
      %1056 = vmatprep.subr.bf16.mxu0 0
      %1057 = vmatpush2.bf16.msra.mxu0 0
      %1058 = vmatprep.mubr.bf16.mxu0 0
      %1059 = vmatmul.mubr.bf16.gmra.mxu0 %v1017
      %v1060 = vpop.f32.mrf.mxu0
      %v1061 = vadd.f32 0.0, %v1060
      %v1062 = vpop.f32.mrf.mxu0
      %v1063 = vadd.f32 0.0, %v1062
      %v1064 = vpop.f32.mrf.mxu0
      %v1065 = vadd.f32 0.0, %v1064
      %v1066 = vpop.f32.mrf.mxu0
      %v1067 = vadd.f32 0.0, %v1066
      %1068 = vdwg.mxu0
      %v1069 = vpack.c.bf16 %v1065, %v1061
      %v1070 = vpack.c.bf16 %v1067, %v1063
      %v1071 = vld [vmem:[%s4] sm:$0xf]
      %v1072 = vld [vmem:[%s4 + $0x4] sm:$0xf]
      %v1073 = vld [vmem:[%s4 + $0x8] sm:$0xf]
      %v1074 = vld [vmem:[%s4 + $0xc] sm:$0xf]
      %v1075 = vld [vmem:[%s4 + $0x10] sm:$0xf]
      %v1076 = vld [vmem:[%s4 + $0x14] sm:$0xf]
      %v1077 = vld [vmem:[%s4 + $0x18] sm:$0xf]
      %v1078 = vld [vmem:[%s4 + $0x1c] sm:$0xf]
      %v1079 = vld [vmem:[%s4 + $0x20] sm:$0xf]
      %v1080 = vld [vmem:[%s4 + $0x24] sm:$0xf]
      %v1081 = vld [vmem:[%s4 + $0x28] sm:$0xf]
      %v1082 = vld [vmem:[%s4 + $0x2c] sm:$0xf]
      %v1083 = vld [vmem:[%s4 + $0x30] sm:$0xf]
      %v1084 = vld [vmem:[%s4 + $0x34] sm:$0xf]
      %v1085 = vld [vmem:[%s4 + $0x38] sm:$0xf]
      %v1086 = vld [vmem:[%s4 + $0x3c] sm:$0xf]
      %v1087 = vld [vmem:[%s4 + $0x40] sm:$0xf]
      %v1088 = vld [vmem:[%s4 + $0x44] sm:$0xf]
      %v1089 = vld [vmem:[%s4 + $0x48] sm:$0xf]
      %v1090 = vld [vmem:[%s4 + $0x4c] sm:$0xf]
      %v1091 = vld [vmem:[%s4 + $0x50] sm:$0xf]
      %v1113 = vunpack.c.l.b16 %v1071
      %v1114 = vunpack.c.l.b16 %v1072
      %v1115 = vunpack.c.l.b16 %v1073
      %v1116 = vunpack.c.l.b16 %v1074
      %v1117 = vunpack.c.l.b16 %v1075
      %v1118 = vunpack.c.l.b16 %v1076
      %v1119 = vunpack.c.l.b16 %v1077
      %v1120 = vunpack.c.l.b16 %v1078
      %v1121 = vunpack.c.l.b16 %v1079
      %v1122 = vunpack.c.l.b16 %v1080
      %v1123 = vunpack.c.l.b16 %v1081
      %v1124 = vunpack.c.l.b16 %v1082
      %v1125 = vunpack.c.l.b16 %v1083
      %v1126 = vunpack.c.l.b16 %v1084
      %v1127 = vunpack.c.l.b16 %v1085
      %v1128 = vunpack.c.l.b16 %v1086
      %v1129 = vunpack.c.l.b16 %v1087
      %v1130 = vunpack.c.l.b16 %v1088
      %v1131 = vunpack.c.l.b16 %v1089
      %v1132 = vunpack.c.l.b16 %v1090
      %v1133 = vunpack.c.l.b16 %v1091
      %v1134 = vpack.c.b16 %v1114, %v1113
      %v1135 = vpack.c.b16 %v1116, %v1115
      %v1136 = vpack.c.b16 %v1118, %v1117
      %v1137 = vpack.c.b16 %v1120, %v1119
      %v1138 = vpack.c.b16 %v1122, %v1121
      %v1139 = vpack.c.b16 %v1124, %v1123
      %v1140 = vpack.c.b16 %v1126, %v1125
      %v1141 = vpack.c.b16 %v1128, %v1127
      %v1142 = vpack.c.b16 %v1130, %v1129
      %v1143 = vpack.c.b16 %v1132, %v1131
      %v1144 = vpack.c.b16 %v1133, %v1133
      %vm1155 = vcmask 326656
      %v1157 = vsel %vm1155, %v1070, 0
      %vm1159 = vcmask 1043456
      %v1161 = vsel %vm1159, %v1144, 0
      %1163 = vmatprep.subr.bf16.mxu0 0
      %1164 = vmatpush1.bf16.msra.mxu0 %v1141
      %1165 = vmatprep.subr.bf16.mxu0 0
      %1166 = vmatpush1.bf16.msra.mxu0 %v1140
      %1167 = vmatprep.subr.bf16.mxu0 0
      %1168 = vmatpush1.bf16.msra.mxu0 %v1139
      %1169 = vmatprep.subr.bf16.mxu0 0
      %1170 = vmatpush1.bf16.msra.mxu0 %v1138
      %1171 = vmatprep.subr.bf16.mxu0 0
      %1172 = vmatpush1.bf16.msra.mxu0 %v1137
      %1173 = vmatprep.subr.bf16.mxu0 0
      %1174 = vmatpush1.bf16.msra.mxu0 %v1136
      %1175 = vmatprep.subr.bf16.mxu0 0
      %1176 = vmatpush1.bf16.msra.mxu0 %v1135
      %1177 = vmatprep.subr.bf16.mxu0 0
      %1178 = vmatpush1.bf16.msra.mxu0 %v1134
      %1179 = vmatprep.subr.bf16.mxu0 0
      %1180 = vmatpush2.bf16.msra.mxu0 0
      %1181 = vmatprep.subr.bf16.mxu0 0
      %1182 = vmatpush2.bf16.msra.mxu0 0
      %1183 = vmatprep.subr.bf16.mxu0 0
      %1184 = vmatpush2.bf16.msra.mxu0 0
      %1185 = vmatprep.subr.bf16.mxu0 0
      %1186 = vmatpush2.bf16.msra.mxu0 0
      %1187 = vmatprep.subr.bf16.mxu0 0
      %1188 = vmatpush2.bf16.msra.mxu0 0
      %1189 = vmatprep.subr.bf16.mxu0 0
      %1190 = vmatpush2.bf16.msra.mxu0 %v1161
      %1191 = vmatprep.subr.bf16.mxu0 0
      %1192 = vmatpush2.bf16.msra.mxu0 %v1143
      %1193 = vmatprep.subr.bf16.mxu0 0
      %1194 = vmatpush2.bf16.msra.mxu0 %v1142
      %1195 = vmatprep.mubr.bf16.mxu0 %v1157
      %1196 = vmatmul.mubr.bf16.gmra.mxu0 %v1069
      %v1197 = vpop.f32.mrf.mxu0
      %v1198 = vadd.f32 0.0, %v1197
      %v1199 = vpop.f32.mrf.mxu0
      %v1200 = vpop.f32.mrf.mxu0
      %v1201 = vadd.f32 0.0, %v1200
      %v1202 = vpop.f32.mrf.mxu0
      %1203 = vdwg.mxu0
      %vm1204 = vcmask 687104
      %1205 = vst.msk [vmem:[#allocation2] sm:$0xff] %vm1204, %v1198
      %vm1206 = vcmask 685056
      %1207 = vst.msk [vmem:[#allocation2 + $0x8] sm:$0x3f] %vm1206, %v1201
      %v1208 = vld [vmem:[#allocation2] sm:$0xff]
      %v1209 = vld [vmem:[#allocation2 + $0x8] sm:$0x3]
      %v1210 = vpack.c.bf16 %v1209, %v1208
      %v1211 = vld [vmem:[%s5] sm:$0xff]
      %v1212 = vld [vmem:[%s5 + $0x8] sm:$0xff]
      %v1213 = vld [vmem:[%s5 + $0x10] sm:$0xff]
      %v1214 = vld [vmem:[%s5 + $0x18] sm:$0xff]
      %v1215 = vld [vmem:[%s5 + $0x20] sm:$0xff]
      %v1216 = vld [vmem:[%s5 + $0x28] sm:$0xff]
      %v1217 = vld [vmem:[%s5 + $0x30] sm:$0xff]
      %v1218 = vld [vmem:[%s5 + $0x38] sm:$0xff]
      %v1219 = vld [vmem:[%s5 + $0x40] sm:$0xff]
      %v1220 = vld [vmem:[%s5 + $0x48] sm:$0xff]
      %v1221 = vld [vmem:[%s5 + $0x50] sm:$0x33]
      %v1222 = vld [vmem:[#allocation2 + $0x1] sm:$0xff]
      %v1223 = vld [vmem:[#allocation2 + $0x9] sm:$0x3]
      %v1224 = vpack.c.bf16 %v1223, %v1222
      %s1225 = scalar_lea.vmem %s5, 88
      %v1226 = vld [vmem:[%s1225] sm:$0xff]
      %v1227 = vld [vmem:[%s1225 + $0x8] sm:$0xff]
      %v1228 = vld [vmem:[%s1225 + $0x10] sm:$0xff]
      %v1229 = vld [vmem:[%s1225 + $0x18] sm:$0xff]
      %v1230 = vld [vmem:[%s1225 + $0x20] sm:$0xff]
      %v1231 = vld [vmem:[%s1225 + $0x28] sm:$0xff]
      %v1232 = vld [vmem:[%s1225 + $0x30] sm:$0xff]
      %v1233 = vld [vmem:[%s1225 + $0x38] sm:$0xff]
      %v1234 = vld [vmem:[%s1225 + $0x40] sm:$0xff]
      %v1235 = vld [vmem:[%s1225 + $0x48] sm:$0xff]
      %v1236 = vld [vmem:[%s1225 + $0x50] sm:$0x33]
      %v1248 = vunpack.c.l.b16 %v1226
      %v1249 = vunpack.c.h.b16 %v1226
      %v1250 = vunpack.c.l.b16 %v1227
      %v1251 = vunpack.c.h.b16 %v1227
      %v1252 = vunpack.c.l.b16 %v1228
      %v1253 = vunpack.c.h.b16 %v1228
      %v1254 = vunpack.c.l.b16 %v1229
      %v1255 = vunpack.c.h.b16 %v1229
      %v1256 = vunpack.c.l.b16 %v1230
      %v1257 = vunpack.c.h.b16 %v1230
      %v1258 = vunpack.c.l.b16 %v1231
      %v1259 = vunpack.c.h.b16 %v1231
      %v1260 = vunpack.c.l.b16 %v1232
      %v1261 = vunpack.c.h.b16 %v1232
      %v1262 = vunpack.c.l.b16 %v1233
      %v1263 = vunpack.c.h.b16 %v1233
      %v1264 = vunpack.c.l.b16 %v1234
      %v1265 = vunpack.c.h.b16 %v1234
      %v1266 = vunpack.c.l.b16 %v1235
      %v1267 = vunpack.c.h.b16 %v1235
      %v1268 = vunpack.c.l.b16 %v1236
      %v1269 = vunpack.c.h.b16 %v1236
      %v1270 = vpack.c.b16 %v1250, %v1248
      %v1271 = vpack.c.b16 %v1251, %v1249
      %v1272 = vpack.c.b16 %v1254, %v1252
      %v1273 = vpack.c.b16 %v1255, %v1253
      %v1274 = vpack.c.b16 %v1258, %v1256
      %v1275 = vpack.c.b16 %v1259, %v1257
      %v1276 = vpack.c.b16 %v1262, %v1260
      %v1277 = vpack.c.b16 %v1263, %v1261
      %v1278 = vpack.c.b16 %v1266, %v1264
      %v1279 = vpack.c.b16 %v1267, %v1265
      %v1280 = vpack.c.b16 %v1268, %v1268
      %v1281 = vpack.c.b16 %v1269, %v1269
      %v1293 = vsel %vm1204, %v1224, 0
      %vm1295 = vcmask 1041408
      %v1297 = vsel %vm1295, %v1280, 0
      %v1300 = vsel %vm1295, %v1281, 0
      %1302 = vmatprep.subr.bf16.mxu0 0
      %1303 = vmatpush1.bf16.msra.mxu0 0
      %1304 = vmatprep.subr.bf16.mxu0 0
      %1305 = vmatpush1.bf16.msra.mxu0 0
      %1306 = vmatprep.subr.bf16.mxu0 %v1300
      %1307 = vmatpush1.bf16.msra.mxu0 %v1297
      %1308 = vmatprep.subr.bf16.mxu0 %v1279
      %1309 = vmatpush1.bf16.msra.mxu0 %v1278
      %1310 = vmatprep.subr.bf16.mxu0 %v1277
      %1311 = vmatpush1.bf16.msra.mxu0 %v1276
      %1312 = vmatprep.subr.bf16.mxu0 %v1275
      %1313 = vmatpush1.bf16.msra.mxu0 %v1274
      %1314 = vmatprep.subr.bf16.mxu0 %v1273
      %1315 = vmatpush1.bf16.msra.mxu0 %v1272
      %1316 = vmatprep.subr.bf16.mxu0 %v1271
      %1317 = vmatpush1.bf16.msra.mxu0 %v1270
      %1318 = vmatprep.subr.bf16.mxu0 0
      %1319 = vmatpush2.bf16.msra.mxu0 0
      %1320 = vmatprep.subr.bf16.mxu0 0
      %1321 = vmatpush2.bf16.msra.mxu0 0
      %1322 = vmatprep.subr.bf16.mxu0 0
      %1323 = vmatpush2.bf16.msra.mxu0 0
      %1324 = vmatprep.subr.bf16.mxu0 0
      %1325 = vmatpush2.bf16.msra.mxu0 0
      %1326 = vmatprep.subr.bf16.mxu0 0
      %1327 = vmatpush2.bf16.msra.mxu0 0
      %1328 = vmatprep.subr.bf16.mxu0 0
      %1329 = vmatpush2.bf16.msra.mxu0 0
      %1330 = vmatprep.subr.bf16.mxu0 0
      %1331 = vmatpush2.bf16.msra.mxu0 0
      %1332 = vmatprep.subr.bf16.mxu0 0
      %1333 = vmatpush2.bf16.msra.mxu0 0
      %1334 = vmatprep.mubr.bf16.mxu0 0
      %1335 = vmatmul.mubr.bf16.gmra.mxu0 %v1293
      %v1336 = vpop.f32.mrf.mxu0
      %v1337 = vadd.f32 0.0, %v1336
      %v1338 = vpop.f32.mrf.mxu0
      %v1339 = vadd.f32 0.0, %v1338
      %v1340 = vpop.f32.mrf.mxu0
      %v1341 = vadd.f32 0.0, %v1340
      %v1342 = vpop.f32.mrf.mxu0
      %v1343 = vadd.f32 0.0, %v1342
      %1344 = vdwg.mxu0
      %v1356 = vunpack.c.l.b16 %v1211
      %v1357 = vunpack.c.h.b16 %v1211
      %v1358 = vunpack.c.l.b16 %v1212
      %v1359 = vunpack.c.h.b16 %v1212
      %v1360 = vunpack.c.l.b16 %v1213
      %v1361 = vunpack.c.h.b16 %v1213
      %v1362 = vunpack.c.l.b16 %v1214
      %v1363 = vunpack.c.h.b16 %v1214
      %v1364 = vunpack.c.l.b16 %v1215
      %v1365 = vunpack.c.h.b16 %v1215
      %v1366 = vunpack.c.l.b16 %v1216
      %v1367 = vunpack.c.h.b16 %v1216
      %v1368 = vunpack.c.l.b16 %v1217
      %v1369 = vunpack.c.h.b16 %v1217
      %v1370 = vunpack.c.l.b16 %v1218
      %v1371 = vunpack.c.h.b16 %v1218
      %v1372 = vunpack.c.l.b16 %v1219
      %v1373 = vunpack.c.h.b16 %v1219
      %v1374 = vunpack.c.l.b16 %v1220
      %v1375 = vunpack.c.h.b16 %v1220
      %v1376 = vunpack.c.l.b16 %v1221
      %v1377 = vunpack.c.h.b16 %v1221
      %v1378 = vpack.c.b16 %v1358, %v1356
      %v1379 = vpack.c.b16 %v1359, %v1357
      %v1380 = vpack.c.b16 %v1362, %v1360
      %v1381 = vpack.c.b16 %v1363, %v1361
      %v1382 = vpack.c.b16 %v1366, %v1364
      %v1383 = vpack.c.b16 %v1367, %v1365
      %v1384 = vpack.c.b16 %v1370, %v1368
      %v1385 = vpack.c.b16 %v1371, %v1369
      %v1386 = vpack.c.b16 %v1374, %v1372
      %v1387 = vpack.c.b16 %v1375, %v1373
      %v1388 = vpack.c.b16 %v1376, %v1376
      %v1389 = vpack.c.b16 %v1377, %v1377
      %v1401 = vsel %vm1204, %v1210, 0
      %v1404 = vsel %vm1295, %v1388, 0
      %v1407 = vsel %vm1295, %v1389, 0
      %1409 = vmatprep.subr.bf16.mxu0 0
      %1410 = vmatpush1.bf16.msra.mxu0 0
      %1411 = vmatprep.subr.bf16.mxu0 0
      %1412 = vmatpush1.bf16.msra.mxu0 0
      %1413 = vmatprep.subr.bf16.mxu0 %v1407
      %1414 = vmatpush1.bf16.msra.mxu0 %v1404
      %1415 = vmatprep.subr.bf16.mxu0 %v1387
      %1416 = vmatpush1.bf16.msra.mxu0 %v1386
      %1417 = vmatprep.subr.bf16.mxu0 %v1385
      %1418 = vmatpush1.bf16.msra.mxu0 %v1384
      %1419 = vmatprep.subr.bf16.mxu0 %v1383
      %1420 = vmatpush1.bf16.msra.mxu0 %v1382
      %1421 = vmatprep.subr.bf16.mxu0 %v1381
      %1422 = vmatpush1.bf16.msra.mxu0 %v1380
      %1423 = vmatprep.subr.bf16.mxu0 %v1379
      %1424 = vmatpush1.bf16.msra.mxu0 %v1378
      %1425 = vmatprep.subr.bf16.mxu0 0
      %1426 = vmatpush2.bf16.msra.mxu0 0
      %1427 = vmatprep.subr.bf16.mxu0 0
      %1428 = vmatpush2.bf16.msra.mxu0 0
      %1429 = vmatprep.subr.bf16.mxu0 0
      %1430 = vmatpush2.bf16.msra.mxu0 0
      %1431 = vmatprep.subr.bf16.mxu0 0
      %1432 = vmatpush2.bf16.msra.mxu0 0
      %1433 = vmatprep.subr.bf16.mxu0 0
      %1434 = vmatpush2.bf16.msra.mxu0 0
      %1435 = vmatprep.subr.bf16.mxu0 0
      %1436 = vmatpush2.bf16.msra.mxu0 0
      %1437 = vmatprep.subr.bf16.mxu0 0
      %1438 = vmatpush2.bf16.msra.mxu0 0
      %1439 = vmatprep.subr.bf16.mxu0 0
      %1440 = vmatpush2.bf16.msra.mxu0 0
      %1441 = vmatprep.mubr.bf16.mxu0 0
      %1442 = vmatmul.mubr.bf16.gmra.mxu0 %v1401
      %v1443 = vpop.f32.mrf.mxu0
      %v1444 = vadd.f32 %v1337, %v1443
      %v1445 = vpop.f32.mrf.mxu0
      %v1446 = vadd.f32 %v1339, %v1445
      %v1447 = vpop.f32.mrf.mxu0
      %v1448 = vadd.f32 %v1341, %v1447
      %v1449 = vpop.f32.mrf.mxu0
      %v1450 = vadd.f32 %v1343, %v1449
      %1451 = vdwg.mxu0
      %v1452 = vld [vmem:[#allocation2 + $0x2] sm:$0xff]
      %v1453 = vld [vmem:[#allocation2 + $0xa] sm:$0x3]
      %v1454 = vpack.c.bf16 %v1453, %v1452
      %s1455 = scalar_lea.vmem %s5, 176
      %v1456 = vld [vmem:[%s1455] sm:$0xff]
      %v1457 = vld [vmem:[%s1455 + $0x8] sm:$0xff]
      %v1458 = vld [vmem:[%s1455 + $0x10] sm:$0xff]
      %v1459 = vld [vmem:[%s1455 + $0x18] sm:$0xff]
      %v1460 = vld [vmem:[%s1455 + $0x20] sm:$0xff]
      %v1461 = vld [vmem:[%s1455 + $0x28] sm:$0xff]
      %v1462 = vld [vmem:[%s1455 + $0x30] sm:$0xff]
      %v1463 = vld [vmem:[%s1455 + $0x38] sm:$0xff]
      %v1464 = vld [vmem:[%s1455 + $0x40] sm:$0xff]
      %v1465 = vld [vmem:[%s1455 + $0x48] sm:$0xff]
      %v1466 = vld [vmem:[%s1455 + $0x50] sm:$0x33]
      %v1478 = vunpack.c.l.b16 %v1456
      %v1479 = vunpack.c.h.b16 %v1456
      %v1480 = vunpack.c.l.b16 %v1457
      %v1481 = vunpack.c.h.b16 %v1457
      %v1482 = vunpack.c.l.b16 %v1458
      %v1483 = vunpack.c.h.b16 %v1458
      %v1484 = vunpack.c.l.b16 %v1459
      %v1485 = vunpack.c.h.b16 %v1459
      %v1486 = vunpack.c.l.b16 %v1460
      %v1487 = vunpack.c.h.b16 %v1460
      %v1488 = vunpack.c.l.b16 %v1461
      %v1489 = vunpack.c.h.b16 %v1461
      %v1490 = vunpack.c.l.b16 %v1462
      %v1491 = vunpack.c.h.b16 %v1462
      %v1492 = vunpack.c.l.b16 %v1463
      %v1493 = vunpack.c.h.b16 %v1463
      %v1494 = vunpack.c.l.b16 %v1464
      %v1495 = vunpack.c.h.b16 %v1464
      %v1496 = vunpack.c.l.b16 %v1465
      %v1497 = vunpack.c.h.b16 %v1465
      %v1498 = vunpack.c.l.b16 %v1466
      %v1499 = vunpack.c.h.b16 %v1466
      %v1500 = vpack.c.b16 %v1480, %v1478
      %v1501 = vpack.c.b16 %v1481, %v1479
      %v1502 = vpack.c.b16 %v1484, %v1482
      %v1503 = vpack.c.b16 %v1485, %v1483
      %v1504 = vpack.c.b16 %v1488, %v1486
      %v1505 = vpack.c.b16 %v1489, %v1487
      %v1506 = vpack.c.b16 %v1492, %v1490
      %v1507 = vpack.c.b16 %v1493, %v1491
      %v1508 = vpack.c.b16 %v1496, %v1494
      %v1509 = vpack.c.b16 %v1497, %v1495
      %v1510 = vpack.c.b16 %v1498, %v1498
      %v1511 = vpack.c.b16 %v1499, %v1499
      %v1523 = vsel %vm1204, %v1454, 0
      %v1526 = vsel %vm1295, %v1510, 0
      %v1529 = vsel %vm1295, %v1511, 0
      %1531 = vmatprep.subr.bf16.mxu0 0
      %1532 = vmatpush1.bf16.msra.mxu0 0
      %1533 = vmatprep.subr.bf16.mxu0 0
      %1534 = vmatpush1.bf16.msra.mxu0 0
      %1535 = vmatprep.subr.bf16.mxu0 %v1529
      %1536 = vmatpush1.bf16.msra.mxu0 %v1526
      %1537 = vmatprep.subr.bf16.mxu0 %v1509
      %1538 = vmatpush1.bf16.msra.mxu0 %v1508
      %1539 = vmatprep.subr.bf16.mxu0 %v1507
      %1540 = vmatpush1.bf16.msra.mxu0 %v1506
      %1541 = vmatprep.subr.bf16.mxu0 %v1505
      %1542 = vmatpush1.bf16.msra.mxu0 %v1504
      %1543 = vmatprep.subr.bf16.mxu0 %v1503
      %1544 = vmatpush1.bf16.msra.mxu0 %v1502
      %1545 = vmatprep.subr.bf16.mxu0 %v1501
      %1546 = vmatpush1.bf16.msra.mxu0 %v1500
      %1547 = vmatprep.subr.bf16.mxu0 0
      %1548 = vmatpush2.bf16.msra.mxu0 0
      %1549 = vmatprep.subr.bf16.mxu0 0
      %1550 = vmatpush2.bf16.msra.mxu0 0
      %1551 = vmatprep.subr.bf16.mxu0 0
      %1552 = vmatpush2.bf16.msra.mxu0 0
      %1553 = vmatprep.subr.bf16.mxu0 0
      %1554 = vmatpush2.bf16.msra.mxu0 0
      %1555 = vmatprep.subr.bf16.mxu0 0
      %1556 = vmatpush2.bf16.msra.mxu0 0
      %1557 = vmatprep.subr.bf16.mxu0 0
      %1558 = vmatpush2.bf16.msra.mxu0 0
      %1559 = vmatprep.subr.bf16.mxu0 0
      %1560 = vmatpush2.bf16.msra.mxu0 0
      %1561 = vmatprep.subr.bf16.mxu0 0
      %1562 = vmatpush2.bf16.msra.mxu0 0
      %1563 = vmatprep.mubr.bf16.mxu0 0
      %1564 = vmatmul.mubr.bf16.gmra.mxu0 %v1523
      %v1565 = vpop.f32.mrf.mxu0
      %v1566 = vadd.f32 0.0, %v1565
      %v1567 = vpop.f32.mrf.mxu0
      %v1568 = vadd.f32 0.0, %v1567
      %v1569 = vpop.f32.mrf.mxu0
      %v1570 = vadd.f32 0.0, %v1569
      %v1571 = vpop.f32.mrf.mxu0
      %v1572 = vadd.f32 0.0, %v1571
      %1573 = vdwg.mxu0
      %v1574 = vadd.f32 %v1444, %v1566
      %v1575 = vadd.f32 %v1446, %v1568
      %v1576 = vadd.f32 %v1448, %v1570
      %v1577 = vadd.f32 %v1450, %v1572
      %v1578 = vld [vmem:[#allocation2 + $0x3] sm:$0xff]
      %v1579 = vld [vmem:[#allocation2 + $0xb] sm:$0x3]
      %v1580 = vpack.c.bf16 %v1579, %v1578
      %s1581 = scalar_lea.vmem %s5, 264
      %v1582 = vld [vmem:[%s1581] sm:$0xff]
      %v1583 = vld [vmem:[%s1581 + $0x8] sm:$0xff]
      %v1584 = vld [vmem:[%s1581 + $0x10] sm:$0xff]
      %v1585 = vld [vmem:[%s1581 + $0x18] sm:$0xff]
      %v1586 = vld [vmem:[%s1581 + $0x20] sm:$0xff]
      %v1587 = vld [vmem:[%s1581 + $0x28] sm:$0xff]
      %v1588 = vld [vmem:[%s1581 + $0x30] sm:$0xff]
      %v1589 = vld [vmem:[%s1581 + $0x38] sm:$0xff]
      %v1590 = vld [vmem:[%s1581 + $0x40] sm:$0xff]
      %v1591 = vld [vmem:[%s1581 + $0x48] sm:$0xff]
      %v1592 = vld [vmem:[%s1581 + $0x50] sm:$0x33]
      %v1604 = vunpack.c.l.b16 %v1582
      %v1605 = vunpack.c.h.b16 %v1582
      %v1606 = vunpack.c.l.b16 %v1583
      %v1607 = vunpack.c.h.b16 %v1583
      %v1608 = vunpack.c.l.b16 %v1584
      %v1609 = vunpack.c.h.b16 %v1584
      %v1610 = vunpack.c.l.b16 %v1585
      %v1611 = vunpack.c.h.b16 %v1585
      %v1612 = vunpack.c.l.b16 %v1586
      %v1613 = vunpack.c.h.b16 %v1586
      %v1614 = vunpack.c.l.b16 %v1587
      %v1615 = vunpack.c.h.b16 %v1587
      %v1616 = vunpack.c.l.b16 %v1588
      %v1617 = vunpack.c.h.b16 %v1588
      %v1618 = vunpack.c.l.b16 %v1589
      %v1619 = vunpack.c.h.b16 %v1589
      %v1620 = vunpack.c.l.b16 %v1590
      %v1621 = vunpack.c.h.b16 %v1590
      %v1622 = vunpack.c.l.b16 %v1591
      %v1623 = vunpack.c.h.b16 %v1591
      %v1624 = vunpack.c.l.b16 %v1592
      %v1625 = vunpack.c.h.b16 %v1592
      %v1626 = vpack.c.b16 %v1606, %v1604
      %v1627 = vpack.c.b16 %v1607, %v1605
      %v1628 = vpack.c.b16 %v1610, %v1608
      %v1629 = vpack.c.b16 %v1611, %v1609
      %v1630 = vpack.c.b16 %v1614, %v1612
      %v1631 = vpack.c.b16 %v1615, %v1613
      %v1632 = vpack.c.b16 %v1618, %v1616
      %v1633 = vpack.c.b16 %v1619, %v1617
      %v1634 = vpack.c.b16 %v1622, %v1620
      %v1635 = vpack.c.b16 %v1623, %v1621
      %v1636 = vpack.c.b16 %v1624, %v1624
      %v1637 = vpack.c.b16 %v1625, %v1625
      %v1649 = vsel %vm1204, %v1580, 0
      %v1652 = vsel %vm1295, %v1636, 0
      %v1655 = vsel %vm1295, %v1637, 0
      %1657 = vmatprep.subr.bf16.mxu0 0
      %1658 = vmatpush1.bf16.msra.mxu0 0
      %1659 = vmatprep.subr.bf16.mxu0 0
      %1660 = vmatpush1.bf16.msra.mxu0 0
      %1661 = vmatprep.subr.bf16.mxu0 %v1655
      %1662 = vmatpush1.bf16.msra.mxu0 %v1652
      %1663 = vmatprep.subr.bf16.mxu0 %v1635
      %1664 = vmatpush1.bf16.msra.mxu0 %v1634
      %1665 = vmatprep.subr.bf16.mxu0 %v1633
      %1666 = vmatpush1.bf16.msra.mxu0 %v1632
      %1667 = vmatprep.subr.bf16.mxu0 %v1631
      %1668 = vmatpush1.bf16.msra.mxu0 %v1630
      %1669 = vmatprep.subr.bf16.mxu0 %v1629
      %1670 = vmatpush1.bf16.msra.mxu0 %v1628
      %1671 = vmatprep.subr.bf16.mxu0 %v1627
      %1672 = vmatpush1.bf16.msra.mxu0 %v1626
      %1673 = vmatprep.subr.bf16.mxu0 0
      %1674 = vmatpush2.bf16.msra.mxu0 0
      %1675 = vmatprep.subr.bf16.mxu0 0
      %1676 = vmatpush2.bf16.msra.mxu0 0
      %1677 = vmatprep.subr.bf16.mxu0 0
      %1678 = vmatpush2.bf16.msra.mxu0 0
      %1679 = vmatprep.subr.bf16.mxu0 0
      %1680 = vmatpush2.bf16.msra.mxu0 0
      %1681 = vmatprep.subr.bf16.mxu0 0
      %1682 = vmatpush2.bf16.msra.mxu0 0
      %1683 = vmatprep.subr.bf16.mxu0 0
      %1684 = vmatpush2.bf16.msra.mxu0 0
      %1685 = vmatprep.subr.bf16.mxu0 0
      %1686 = vmatpush2.bf16.msra.mxu0 0
      %1687 = vmatprep.subr.bf16.mxu0 0
      %1688 = vmatpush2.bf16.msra.mxu0 0
      %1689 = vmatprep.mubr.bf16.mxu0 0
      %1690 = vmatmul.mubr.bf16.gmra.mxu0 %v1649
      %v1691 = vpop.f32.mrf.mxu0
      %v1692 = vadd.f32 0.0, %v1691
      %v1693 = vpop.f32.mrf.mxu0
      %v1694 = vadd.f32 0.0, %v1693
      %v1695 = vpop.f32.mrf.mxu0
      %v1696 = vadd.f32 0.0, %v1695
      %v1697 = vpop.f32.mrf.mxu0
      %v1698 = vadd.f32 0.0, %v1697
      %1699 = vdwg.mxu0
      %v1700 = vadd.f32 %v1574, %v1692
      %v1701 = vadd.f32 %v1575, %v1694
      %v1702 = vadd.f32 %v1576, %v1696
      %v1703 = vadd.f32 %v1577, %v1698
      %v1704 = vld [vmem:[#allocation2 + $0x4] sm:$0xff]
      %v1705 = vld [vmem:[#allocation2 + $0xc] sm:$0x3]
      %v1706 = vpack.c.bf16 %v1705, %v1704
      %s1707 = scalar_lea.vmem %s5, 352
      %v1708 = vld [vmem:[%s1707] sm:$0xff]
      %v1709 = vld [vmem:[%s1707 + $0x8] sm:$0xff]
      %v1710 = vld [vmem:[%s1707 + $0x10] sm:$0xff]
      %v1711 = vld [vmem:[%s1707 + $0x18] sm:$0xff]
      %v1712 = vld [vmem:[%s1707 + $0x20] sm:$0xff]
      %v1713 = vld [vmem:[%s1707 + $0x28] sm:$0xff]
      %v1714 = vld [vmem:[%s1707 + $0x30] sm:$0xff]
      %v1715 = vld [vmem:[%s1707 + $0x38] sm:$0xff]
      %v1716 = vld [vmem:[%s1707 + $0x40] sm:$0xff]
      %v1717 = vld [vmem:[%s1707 + $0x48] sm:$0xff]
      %v1718 = vld [vmem:[%s1707 + $0x50] sm:$0x33]
      %v1730 = vunpack.c.l.b16 %v1708
      %v1731 = vunpack.c.h.b16 %v1708
      %v1732 = vunpack.c.l.b16 %v1709
      %v1733 = vunpack.c.h.b16 %v1709
      %v1734 = vunpack.c.l.b16 %v1710
      %v1735 = vunpack.c.h.b16 %v1710
      %v1736 = vunpack.c.l.b16 %v1711
      %v1737 = vunpack.c.h.b16 %v1711
      %v1738 = vunpack.c.l.b16 %v1712
      %v1739 = vunpack.c.h.b16 %v1712
      %v1740 = vunpack.c.l.b16 %v1713
      %v1741 = vunpack.c.h.b16 %v1713
      %v1742 = vunpack.c.l.b16 %v1714
      %v1743 = vunpack.c.h.b16 %v1714
      %v1744 = vunpack.c.l.b16 %v1715
      %v1745 = vunpack.c.h.b16 %v1715
      %v1746 = vunpack.c.l.b16 %v1716
      %v1747 = vunpack.c.h.b16 %v1716
      %v1748 = vunpack.c.l.b16 %v1717
      %v1749 = vunpack.c.h.b16 %v1717
      %v1750 = vunpack.c.l.b16 %v1718
      %v1751 = vunpack.c.h.b16 %v1718
      %v1752 = vpack.c.b16 %v1732, %v1730
      %v1753 = vpack.c.b16 %v1733, %v1731
      %v1754 = vpack.c.b16 %v1736, %v1734
      %v1755 = vpack.c.b16 %v1737, %v1735
      %v1756 = vpack.c.b16 %v1740, %v1738
      %v1757 = vpack.c.b16 %v1741, %v1739
      %v1758 = vpack.c.b16 %v1744, %v1742
      %v1759 = vpack.c.b16 %v1745, %v1743
      %v1760 = vpack.c.b16 %v1748, %v1746
      %v1761 = vpack.c.b16 %v1749, %v1747
      %v1762 = vpack.c.b16 %v1750, %v1750
      %v1763 = vpack.c.b16 %v1751, %v1751
      %v1775 = vsel %vm1204, %v1706, 0
      %v1778 = vsel %vm1295, %v1762, 0
      %v1781 = vsel %vm1295, %v1763, 0
      %1783 = vmatprep.subr.bf16.mxu0 0
      %1784 = vmatpush1.bf16.msra.mxu0 0
      %1785 = vmatprep.subr.bf16.mxu0 0
      %1786 = vmatpush1.bf16.msra.mxu0 0
      %1787 = vmatprep.subr.bf16.mxu0 %v1781
      %1788 = vmatpush1.bf16.msra.mxu0 %v1778
      %1789 = vmatprep.subr.bf16.mxu0 %v1761
      %1790 = vmatpush1.bf16.msra.mxu0 %v1760
      %1791 = vmatprep.subr.bf16.mxu0 %v1759
      %1792 = vmatpush1.bf16.msra.mxu0 %v1758
      %1793 = vmatprep.subr.bf16.mxu0 %v1757
      %1794 = vmatpush1.bf16.msra.mxu0 %v1756
      %1795 = vmatprep.subr.bf16.mxu0 %v1755
      %1796 = vmatpush1.bf16.msra.mxu0 %v1754
      %1797 = vmatprep.subr.bf16.mxu0 %v1753
      %1798 = vmatpush1.bf16.msra.mxu0 %v1752
      %1799 = vmatprep.subr.bf16.mxu0 0
      %1800 = vmatpush2.bf16.msra.mxu0 0
      %1801 = vmatprep.subr.bf16.mxu0 0
      %1802 = vmatpush2.bf16.msra.mxu0 0
      %1803 = vmatprep.subr.bf16.mxu0 0
      %1804 = vmatpush2.bf16.msra.mxu0 0
      %1805 = vmatprep.subr.bf16.mxu0 0
      %1806 = vmatpush2.bf16.msra.mxu0 0
      %1807 = vmatprep.subr.bf16.mxu0 0
      %1808 = vmatpush2.bf16.msra.mxu0 0
      %1809 = vmatprep.subr.bf16.mxu0 0
      %1810 = vmatpush2.bf16.msra.mxu0 0
      %1811 = vmatprep.subr.bf16.mxu0 0
      %1812 = vmatpush2.bf16.msra.mxu0 0
      %1813 = vmatprep.subr.bf16.mxu0 0
      %1814 = vmatpush2.bf16.msra.mxu0 0
      %1815 = vmatprep.mubr.bf16.mxu0 0
      %1816 = vmatmul.mubr.bf16.gmra.mxu0 %v1775
      %v1817 = vpop.f32.mrf.mxu0
      %v1818 = vadd.f32 0.0, %v1817
      %v1819 = vpop.f32.mrf.mxu0
      %v1820 = vadd.f32 0.0, %v1819
      %v1821 = vpop.f32.mrf.mxu0
      %v1822 = vadd.f32 0.0, %v1821
      %v1823 = vpop.f32.mrf.mxu0
      %v1824 = vadd.f32 0.0, %v1823
      %1825 = vdwg.mxu0
      %v1826 = vadd.f32 %v1700, %v1818
      %v1827 = vadd.f32 %v1701, %v1820
      %v1828 = vadd.f32 %v1702, %v1822
      %v1829 = vadd.f32 %v1703, %v1824
      %v1830 = vld [vmem:[%s6] sm:$0x3]
      %v1832 = vlaneseq
      %v1833 = vshrl.u32 %v1832, 7
      %v1834 = vsub.s32 0, %v1833
      %v1835 = vrot.slane %v1830, %v1834
      %v1836 = vlaneseq
      %v1837 = vshrl.u32 %v1836, 7
      %v1838 = vsub.s32 1, %v1837
      %v1839 = vrot.slane %v1830, %v1838
      %v1842 = vadd.f32 %v1826, %v1835
      %v1843 = vadd.f32 %v1827, %v1839
      %v1844 = vadd.f32 %v1828, %v1835
      %v1845 = vadd.f32 %v1829, %v1839
      %v1846 = vtanh.pop %v1842
      %v1847 = vtanh.pop %v1843
      %v1848 = vtanh.pop %v1844
      %v1849 = vtanh.pop %v1845
      %v1850 = vmul.f32 %v1846, 1.7159
      %v1851 = vmul.f32 %v1847, 1.7159
      %v1852 = vmul.f32 %v1848, 1.7159
      %v1853 = vmul.f32 %v1849, 1.7159
      %v1854 = vpack.c.bf16 %v1852, %v1850
      %v1855 = vpack.c.bf16 %v1853, %v1851
      %v1856 = vld [vmem:[%s7] sm:$0x7]
      %vm1857 = vcmask 80896
      %v1859 = vsel %vm1857, %v1856, 0
      %vm1861 = vcmask 1044480
      %v1863 = vsel %vm1861, %v1854, 0
      %v1866 = vsel %vm1861, %v1855, 0
      %1868 = vmatprep.subr.bf16.mxu0 0
      %1869 = vmatpush1.bf16.msra.mxu0 0
      %1870 = vmatprep.subr.bf16.mxu0 0
      %1871 = vmatpush1.bf16.msra.mxu0 0
      %1872 = vmatprep.subr.bf16.mxu0 0
      %1873 = vmatpush1.bf16.msra.mxu0 0
      %1874 = vmatprep.subr.bf16.mxu0 0
      %1875 = vmatpush1.bf16.msra.mxu0 0
      %1876 = vmatprep.subr.bf16.mxu0 0
      %1877 = vmatpush1.bf16.msra.mxu0 0
      %1878 = vmatprep.subr.bf16.mxu0 0
      %1879 = vmatpush1.bf16.msra.mxu0 0
      %1880 = vmatprep.subr.bf16.mxu0 0
      %1881 = vmatpush1.bf16.msra.mxu0 0
      %1882 = vmatprep.subr.bf16.mxu0 %v1866
      %1883 = vmatpush1.bf16.msra.mxu0 %v1863
      %1884 = vmatprep.subr.bf16.mxu0 0
      %1885 = vmatpush2.bf16.msra.mxu0 0
      %1886 = vmatprep.subr.bf16.mxu0 0
      %1887 = vmatpush2.bf16.msra.mxu0 0
      %1888 = vmatprep.subr.bf16.mxu0 0
      %1889 = vmatpush2.bf16.msra.mxu0 0
      %1890 = vmatprep.subr.bf16.mxu0 0
      %1891 = vmatpush2.bf16.msra.mxu0 0
      %1892 = vmatprep.subr.bf16.mxu0 0
      %1893 = vmatpush2.bf16.msra.mxu0 0
      %1894 = vmatprep.subr.bf16.mxu0 0
      %1895 = vmatpush2.bf16.msra.mxu0 0
      %1896 = vmatprep.subr.bf16.mxu0 0
      %1897 = vmatpush2.bf16.msra.mxu0 0
      %1898 = vmatprep.subr.bf16.mxu0 0
      %1899 = vmatpush2.bf16.msra.mxu0 0
      %1900 = vmatprep.mubr.bf16.mxu0 0
      %1901 = vmatmul.mubr.bf16.gmra.mxu0 %v1859
      %v1902 = vpop.f32.mrf.mxu0
      %v1903 = vadd.f32 0.0, %v1902
      %v1904 = vpop.f32.mrf.mxu0
      %v1905 = vadd.f32 0.0, %v1904
      %v1906 = vpop.f32.mrf.mxu0
      %v1907 = vpop.f32.mrf.mxu0
      %1908 = vdwg.mxu0
      %v1909 = vpack.c.bf16 %v1903, %v1903
      %v1910 = vpack.c.bf16 %v1905, %v1905
      %v1911 = vld [vmem:[%s8] sm:$0xf]
      %v1912 = vld [vmem:[%s8 + $0x4] sm:$0xf]
      %v1913 = vld [vmem:[%s8 + $0x8] sm:$0xf]
      %v1914 = vld [vmem:[%s8 + $0xc] sm:$0xf]
      %v1915 = vld [vmem:[%s8 + $0x10] sm:$0xf]
      %v1916 = vld [vmem:[%s8 + $0x14] sm:$0xf]
      %v1917 = vld [vmem:[%s8 + $0x18] sm:$0xf]
      %v1918 = vld [vmem:[%s8 + $0x1c] sm:$0xf]
      %v1919 = vld [vmem:[%s8 + $0x20] sm:$0xf]
      %v1920 = vld [vmem:[%s8 + $0x24] sm:$0xf]
      %v1921 = vld [vmem:[%s8 + $0x28] sm:$0xf]
      %v1922 = vld [vmem:[%s8 + $0x2c] sm:$0xf]
      %v1923 = vld [vmem:[%s8 + $0x30] sm:$0xf]
      %v1924 = vld [vmem:[%s8 + $0x34] sm:$0xf]
      %v1925 = vld [vmem:[%s8 + $0x38] sm:$0xf]
      %v1926 = vld [vmem:[%s8 + $0x3c] sm:$0xf]
      %v1927 = vld [vmem:[%s8 + $0x40] sm:$0xf]
      %v1928 = vld [vmem:[%s8 + $0x44] sm:$0xf]
      %v1929 = vld [vmem:[%s8 + $0x48] sm:$0xf]
      %v1930 = vld [vmem:[%s8 + $0x4c] sm:$0xf]
      %v1951 = vunpack.c.l.b16 %v1911
      %v1952 = vunpack.c.l.b16 %v1912
      %v1953 = vunpack.c.l.b16 %v1913
      %v1954 = vunpack.c.l.b16 %v1914
      %v1955 = vunpack.c.l.b16 %v1915
      %v1956 = vunpack.c.l.b16 %v1916
      %v1957 = vunpack.c.l.b16 %v1917
      %v1958 = vunpack.c.l.b16 %v1918
      %v1959 = vunpack.c.l.b16 %v1919
      %v1960 = vunpack.c.l.b16 %v1920
      %v1961 = vunpack.c.l.b16 %v1921
      %v1962 = vunpack.c.l.b16 %v1922
      %v1963 = vunpack.c.l.b16 %v1923
      %v1964 = vunpack.c.l.b16 %v1924
      %v1965 = vunpack.c.l.b16 %v1925
      %v1966 = vunpack.c.l.b16 %v1926
      %v1967 = vunpack.c.l.b16 %v1927
      %v1968 = vunpack.c.l.b16 %v1928
      %v1969 = vunpack.c.l.b16 %v1929
      %v1970 = vunpack.c.l.b16 %v1930
      %v1971 = vpack.c.b16 %v1952, %v1951
      %v1972 = vpack.c.b16 %v1954, %v1953
      %v1973 = vpack.c.b16 %v1956, %v1955
      %v1974 = vpack.c.b16 %v1958, %v1957
      %v1975 = vpack.c.b16 %v1960, %v1959
      %v1976 = vpack.c.b16 %v1962, %v1961
      %v1977 = vpack.c.b16 %v1964, %v1963
      %v1978 = vpack.c.b16 %v1966, %v1965
      %v1979 = vpack.c.b16 %v1968, %v1967
      %v1980 = vpack.c.b16 %v1970, %v1969
      %v1992 = vsel %vm535, %v1910, 0
      %1994 = vmatprep.subr.bf16.mxu0 0
      %1995 = vmatpush1.bf16.msra.mxu0 %v1978
      %1996 = vmatprep.subr.bf16.mxu0 0
      %1997 = vmatpush1.bf16.msra.mxu0 %v1977
      %1998 = vmatprep.subr.bf16.mxu0 0
      %1999 = vmatpush1.bf16.msra.mxu0 %v1976
      %2000 = vmatprep.subr.bf16.mxu0 0
      %2001 = vmatpush1.bf16.msra.mxu0 %v1975
      %2002 = vmatprep.subr.bf16.mxu0 0
      %2003 = vmatpush1.bf16.msra.mxu0 %v1974
      %2004 = vmatprep.subr.bf16.mxu0 0
      %2005 = vmatpush1.bf16.msra.mxu0 %v1973
      %2006 = vmatprep.subr.bf16.mxu0 0
      %2007 = vmatpush1.bf16.msra.mxu0 %v1972
      %2008 = vmatprep.subr.bf16.mxu0 0
      %2009 = vmatpush1.bf16.msra.mxu0 %v1971
      %2010 = vmatprep.subr.bf16.mxu0 0
      %2011 = vmatpush2.bf16.msra.mxu0 0
      %2012 = vmatprep.subr.bf16.mxu0 0
      %2013 = vmatpush2.bf16.msra.mxu0 0
      %2014 = vmatprep.subr.bf16.mxu0 0
      %2015 = vmatpush2.bf16.msra.mxu0 0
      %2016 = vmatprep.subr.bf16.mxu0 0
      %2017 = vmatpush2.bf16.msra.mxu0 0
      %2018 = vmatprep.subr.bf16.mxu0 0
      %2019 = vmatpush2.bf16.msra.mxu0 0
      %2020 = vmatprep.subr.bf16.mxu0 0
      %2021 = vmatpush2.bf16.msra.mxu0 0
      %2022 = vmatprep.subr.bf16.mxu0 0
      %2023 = vmatpush2.bf16.msra.mxu0 %v1980
      %2024 = vmatprep.subr.bf16.mxu0 0
      %2025 = vmatpush2.bf16.msra.mxu0 %v1979
      %2026 = vmatprep.mubr.bf16.mxu0 %v1992
      %2027 = vmatmul.mubr.bf16.gmra.mxu0 %v1909
      %v2028 = vpop.f32.mrf.mxu0
      %v2029 = vadd.f32 0.0, %v2028
      %v2030 = vpop.f32.mrf.mxu0
      %v2031 = vpop.f32.mrf.mxu0
      %v2032 = vpop.f32.mrf.mxu0
      %2033 = vdwg.mxu0
      %vm2034 = vcmask 651264
      %2035 = vst.msk [vmem:[#allocation3] sm:$0x1f] %vm2034, %v2029
      %v2036 = vld [vmem:[#allocation3] sm:$0x1]
      %v2037 = vpack.c.bf16 %v2036, %v2036
      %v2038 = vld [vmem:[%s9] sm:$0xf]
      %v2039 = vld [vmem:[%s9 + $0x4] sm:$0xf]
      %v2040 = vld [vmem:[%s9 + $0x8] sm:$0xf]
      %v2041 = vld [vmem:[%s9 + $0xc] sm:$0xf]
      %v2042 = vld [vmem:[%s9 + $0x10] sm:$0xf]
      %v2043 = vld [vmem:[%s9 + $0x14] sm:$0xf]
      %v2044 = vld [vmem:[%s9 + $0x18] sm:$0xf]
      %v2045 = vld [vmem:[%s9 + $0x1c] sm:$0xf]
      %v2046 = vld [vmem:[%s9 + $0x20] sm:$0xf]
      %v2047 = vld [vmem:[%s9 + $0x24] sm:$0xf]
      %v2048 = vld [vmem:[#allocation3 + $0x1] sm:$0x1]
      %v2049 = vpack.c.bf16 %v2048, %v2048
      %s2050 = scalar_lea.vmem %s9, 40
      %v2051 = vld [vmem:[%s2050] sm:$0xf]
      %v2052 = vld [vmem:[%s2050 + $0x4] sm:$0xf]
      %v2053 = vld [vmem:[%s2050 + $0x8] sm:$0xf]
      %v2054 = vld [vmem:[%s2050 + $0xc] sm:$0xf]
      %v2055 = vld [vmem:[%s2050 + $0x10] sm:$0xf]
      %v2056 = vld [vmem:[%s2050 + $0x14] sm:$0xf]
      %v2057 = vld [vmem:[%s2050 + $0x18] sm:$0xf]
      %v2058 = vld [vmem:[%s2050 + $0x1c] sm:$0xf]
      %v2059 = vld [vmem:[%s2050 + $0x20] sm:$0xf]
      %v2060 = vld [vmem:[%s2050 + $0x24] sm:$0xf]
      %v2071 = vunpack.c.l.b16 %v2051
      %v2072 = vunpack.c.l.b16 %v2052
      %v2073 = vunpack.c.l.b16 %v2053
      %v2074 = vunpack.c.l.b16 %v2054
      %v2075 = vunpack.c.l.b16 %v2055
      %v2076 = vunpack.c.l.b16 %v2056
      %v2077 = vunpack.c.l.b16 %v2057
      %v2078 = vunpack.c.l.b16 %v2058
      %v2079 = vunpack.c.l.b16 %v2059
      %v2080 = vunpack.c.l.b16 %v2060
      %v2081 = vpack.c.b16 %v2072, %v2071
      %v2082 = vpack.c.b16 %v2074, %v2073
      %v2083 = vpack.c.b16 %v2076, %v2075
      %v2084 = vpack.c.b16 %v2078, %v2077
      %v2085 = vpack.c.b16 %v2080, %v2079
      %vm2091 = vcmask 654336
      %v2093 = vsel %vm2091, %v2049, 0
      %2095 = vmatprep.subr.bf16.mxu0 0
      %2096 = vmatpush1.bf16.msra.mxu0 0
      %2097 = vmatprep.subr.bf16.mxu0 0
      %2098 = vmatpush1.bf16.msra.mxu0 0
      %2099 = vmatprep.subr.bf16.mxu0 0
      %2100 = vmatpush1.bf16.msra.mxu0 0
      %2101 = vmatprep.subr.bf16.mxu0 0
      %2102 = vmatpush1.bf16.msra.mxu0 %v2085
      %2103 = vmatprep.subr.bf16.mxu0 0
      %2104 = vmatpush1.bf16.msra.mxu0 %v2084
      %2105 = vmatprep.subr.bf16.mxu0 0
      %2106 = vmatpush1.bf16.msra.mxu0 %v2083
      %2107 = vmatprep.subr.bf16.mxu0 0
      %2108 = vmatpush1.bf16.msra.mxu0 %v2082
      %2109 = vmatprep.subr.bf16.mxu0 0
      %2110 = vmatpush1.bf16.msra.mxu0 %v2081
      %2111 = vmatprep.subr.bf16.mxu0 0
      %2112 = vmatpush2.bf16.msra.mxu0 0
      %2113 = vmatprep.subr.bf16.mxu0 0
      %2114 = vmatpush2.bf16.msra.mxu0 0
      %2115 = vmatprep.subr.bf16.mxu0 0
      %2116 = vmatpush2.bf16.msra.mxu0 0
      %2117 = vmatprep.subr.bf16.mxu0 0
      %2118 = vmatpush2.bf16.msra.mxu0 0
      %2119 = vmatprep.subr.bf16.mxu0 0
      %2120 = vmatpush2.bf16.msra.mxu0 0
      %2121 = vmatprep.subr.bf16.mxu0 0
      %2122 = vmatpush2.bf16.msra.mxu0 0
      %2123 = vmatprep.subr.bf16.mxu0 0
      %2124 = vmatpush2.bf16.msra.mxu0 0
      %2125 = vmatprep.subr.bf16.mxu0 0
      %2126 = vmatpush2.bf16.msra.mxu0 0
      %2127 = vmatprep.mubr.bf16.mxu0 0
      %2128 = vmatmul.mubr.bf16.gmra.mxu0 %v2093
      %v2129 = vpop.f32.mrf.mxu0
      %v2130 = vadd.f32 0.0, %v2129
      %v2131 = vpop.f32.mrf.mxu0
      %v2132 = vpop.f32.mrf.mxu0
      %v2133 = vpop.f32.mrf.mxu0
      %2134 = vdwg.mxu0
      %v2145 = vunpack.c.l.b16 %v2038
      %v2146 = vunpack.c.l.b16 %v2039
      %v2147 = vunpack.c.l.b16 %v2040
      %v2148 = vunpack.c.l.b16 %v2041
      %v2149 = vunpack.c.l.b16 %v2042
      %v2150 = vunpack.c.l.b16 %v2043
      %v2151 = vunpack.c.l.b16 %v2044
      %v2152 = vunpack.c.l.b16 %v2045
      %v2153 = vunpack.c.l.b16 %v2046
      %v2154 = vunpack.c.l.b16 %v2047
      %v2155 = vpack.c.b16 %v2146, %v2145
      %v2156 = vpack.c.b16 %v2148, %v2147
      %v2157 = vpack.c.b16 %v2150, %v2149
      %v2158 = vpack.c.b16 %v2152, %v2151
      %v2159 = vpack.c.b16 %v2154, %v2153
      %v2166 = vsel %vm2091, %v2037, 0
      %2168 = vmatprep.subr.bf16.mxu0 0
      %2169 = vmatpush1.bf16.msra.mxu0 0
      %2170 = vmatprep.subr.bf16.mxu0 0
      %2171 = vmatpush1.bf16.msra.mxu0 0
      %2172 = vmatprep.subr.bf16.mxu0 0
      %2173 = vmatpush1.bf16.msra.mxu0 0
      %2174 = vmatprep.subr.bf16.mxu0 0
      %2175 = vmatpush1.bf16.msra.mxu0 %v2159
      %2176 = vmatprep.subr.bf16.mxu0 0
      %2177 = vmatpush1.bf16.msra.mxu0 %v2158
      %2178 = vmatprep.subr.bf16.mxu0 0
      %2179 = vmatpush1.bf16.msra.mxu0 %v2157
      %2180 = vmatprep.subr.bf16.mxu0 0
      %2181 = vmatpush1.bf16.msra.mxu0 %v2156
      %2182 = vmatprep.subr.bf16.mxu0 0
      %2183 = vmatpush1.bf16.msra.mxu0 %v2155
      %2184 = vmatprep.subr.bf16.mxu0 0
      %2185 = vmatpush2.bf16.msra.mxu0 0
      %2186 = vmatprep.subr.bf16.mxu0 0
      %2187 = vmatpush2.bf16.msra.mxu0 0
      %2188 = vmatprep.subr.bf16.mxu0 0
      %2189 = vmatpush2.bf16.msra.mxu0 0
      %2190 = vmatprep.subr.bf16.mxu0 0
      %2191 = vmatpush2.bf16.msra.mxu0 0
      %2192 = vmatprep.subr.bf16.mxu0 0
      %2193 = vmatpush2.bf16.msra.mxu0 0
      %2194 = vmatprep.subr.bf16.mxu0 0
      %2195 = vmatpush2.bf16.msra.mxu0 0
      %2196 = vmatprep.subr.bf16.mxu0 0
      %2197 = vmatpush2.bf16.msra.mxu0 0
      %2198 = vmatprep.subr.bf16.mxu0 0
      %2199 = vmatpush2.bf16.msra.mxu0 0
      %2200 = vmatprep.mubr.bf16.mxu0 0
      %2201 = vmatmul.mubr.bf16.gmra.mxu0 %v2166
      %v2202 = vpop.f32.mrf.mxu0
      %v2203 = vadd.f32 %v2130, %v2202
      %v2204 = vpop.f32.mrf.mxu0
      %v2205 = vpop.f32.mrf.mxu0
      %v2206 = vpop.f32.mrf.mxu0
      %2207 = vdwg.mxu0
      %v2208 = vld [vmem:[#allocation3 + $0x2] sm:$0x1]
      %v2209 = vpack.c.bf16 %v2208, %v2208
      %s2210 = scalar_lea.vmem %s9, 80
      %v2211 = vld [vmem:[%s2210] sm:$0xf]
      %v2212 = vld [vmem:[%s2210 + $0x4] sm:$0xf]
      %v2213 = vld [vmem:[%s2210 + $0x8] sm:$0xf]
      %v2214 = vld [vmem:[%s2210 + $0xc] sm:$0xf]
      %v2215 = vld [vmem:[%s2210 + $0x10] sm:$0xf]
      %v2216 = vld [vmem:[%s2210 + $0x14] sm:$0xf]
      %v2217 = vld [vmem:[%s2210 + $0x18] sm:$0xf]
      %v2218 = vld [vmem:[%s2210 + $0x1c] sm:$0xf]
      %v2219 = vld [vmem:[%s2210 + $0x20] sm:$0xf]
      %v2220 = vld [vmem:[%s2210 + $0x24] sm:$0xf]
      %v2231 = vunpack.c.l.b16 %v2211
      %v2232 = vunpack.c.l.b16 %v2212
      %v2233 = vunpack.c.l.b16 %v2213
      %v2234 = vunpack.c.l.b16 %v2214
      %v2235 = vunpack.c.l.b16 %v2215
      %v2236 = vunpack.c.l.b16 %v2216
      %v2237 = vunpack.c.l.b16 %v2217
      %v2238 = vunpack.c.l.b16 %v2218
      %v2239 = vunpack.c.l.b16 %v2219
      %v2240 = vunpack.c.l.b16 %v2220
      %v2241 = vpack.c.b16 %v2232, %v2231
      %v2242 = vpack.c.b16 %v2234, %v2233
      %v2243 = vpack.c.b16 %v2236, %v2235
      %v2244 = vpack.c.b16 %v2238, %v2237
      %v2245 = vpack.c.b16 %v2240, %v2239
      %v2252 = vsel %vm2091, %v2209, 0
      %2254 = vmatprep.subr.bf16.mxu0 0
      %2255 = vmatpush1.bf16.msra.mxu0 0
      %2256 = vmatprep.subr.bf16.mxu0 0
      %2257 = vmatpush1.bf16.msra.mxu0 0
      %2258 = vmatprep.subr.bf16.mxu0 0
      %2259 = vmatpush1.bf16.msra.mxu0 0
      %2260 = vmatprep.subr.bf16.mxu0 0
      %2261 = vmatpush1.bf16.msra.mxu0 %v2245
      %2262 = vmatprep.subr.bf16.mxu0 0
      %2263 = vmatpush1.bf16.msra.mxu0 %v2244
      %2264 = vmatprep.subr.bf16.mxu0 0
      %2265 = vmatpush1.bf16.msra.mxu0 %v2243
      %2266 = vmatprep.subr.bf16.mxu0 0
      %2267 = vmatpush1.bf16.msra.mxu0 %v2242
      %2268 = vmatprep.subr.bf16.mxu0 0
      %2269 = vmatpush1.bf16.msra.mxu0 %v2241
      %2270 = vmatprep.subr.bf16.mxu0 0
      %2271 = vmatpush2.bf16.msra.mxu0 0
      %2272 = vmatprep.subr.bf16.mxu0 0
      %2273 = vmatpush2.bf16.msra.mxu0 0
      %2274 = vmatprep.subr.bf16.mxu0 0
      %2275 = vmatpush2.bf16.msra.mxu0 0
      %2276 = vmatprep.subr.bf16.mxu0 0
      %2277 = vmatpush2.bf16.msra.mxu0 0
      %2278 = vmatprep.subr.bf16.mxu0 0
      %2279 = vmatpush2.bf16.msra.mxu0 0
      %2280 = vmatprep.subr.bf16.mxu0 0
      %2281 = vmatpush2.bf16.msra.mxu0 0
      %2282 = vmatprep.subr.bf16.mxu0 0
      %2283 = vmatpush2.bf16.msra.mxu0 0
      %2284 = vmatprep.subr.bf16.mxu0 0
      %2285 = vmatpush2.bf16.msra.mxu0 0
      %2286 = vmatprep.mubr.bf16.mxu0 0
      %2287 = vmatmul.mubr.bf16.gmra.mxu0 %v2252
      %v2288 = vpop.f32.mrf.mxu0
      %v2289 = vadd.f32 0.0, %v2288
      %v2290 = vpop.f32.mrf.mxu0
      %v2291 = vpop.f32.mrf.mxu0
      %v2292 = vpop.f32.mrf.mxu0
      %2293 = vdwg.mxu0
      %v2294 = vadd.f32 %v2203, %v2289
      %v2295 = vld [vmem:[#allocation3 + $0x3] sm:$0x1]
      %v2296 = vpack.c.bf16 %v2295, %v2295
      %s2297 = scalar_lea.vmem %s9, 120
      %v2298 = vld [vmem:[%s2297] sm:$0xf]
      %v2299 = vld [vmem:[%s2297 + $0x4] sm:$0xf]
      %v2300 = vld [vmem:[%s2297 + $0x8] sm:$0xf]
      %v2301 = vld [vmem:[%s2297 + $0xc] sm:$0xf]
      %v2302 = vld [vmem:[%s2297 + $0x10] sm:$0xf]
      %v2303 = vld [vmem:[%s2297 + $0x14] sm:$0xf]
      %v2304 = vld [vmem:[%s2297 + $0x18] sm:$0xf]
      %v2305 = vld [vmem:[%s2297 + $0x1c] sm:$0xf]
      %v2306 = vld [vmem:[%s2297 + $0x20] sm:$0xf]
      %v2307 = vld [vmem:[%s2297 + $0x24] sm:$0xf]
      %v2318 = vunpack.c.l.b16 %v2298
      %v2319 = vunpack.c.l.b16 %v2299
      %v2320 = vunpack.c.l.b16 %v2300
      %v2321 = vunpack.c.l.b16 %v2301
      %v2322 = vunpack.c.l.b16 %v2302
      %v2323 = vunpack.c.l.b16 %v2303
      %v2324 = vunpack.c.l.b16 %v2304
      %v2325 = vunpack.c.l.b16 %v2305
      %v2326 = vunpack.c.l.b16 %v2306
      %v2327 = vunpack.c.l.b16 %v2307
      %v2328 = vpack.c.b16 %v2319, %v2318
      %v2329 = vpack.c.b16 %v2321, %v2320
      %v2330 = vpack.c.b16 %v2323, %v2322
      %v2331 = vpack.c.b16 %v2325, %v2324
      %v2332 = vpack.c.b16 %v2327, %v2326
      %v2339 = vsel %vm2091, %v2296, 0
      %2341 = vmatprep.subr.bf16.mxu0 0
      %2342 = vmatpush1.bf16.msra.mxu0 0
      %2343 = vmatprep.subr.bf16.mxu0 0
      %2344 = vmatpush1.bf16.msra.mxu0 0
      %2345 = vmatprep.subr.bf16.mxu0 0
      %2346 = vmatpush1.bf16.msra.mxu0 0
      %2347 = vmatprep.subr.bf16.mxu0 0
      %2348 = vmatpush1.bf16.msra.mxu0 %v2332
      %2349 = vmatprep.subr.bf16.mxu0 0
      %2350 = vmatpush1.bf16.msra.mxu0 %v2331
      %2351 = vmatprep.subr.bf16.mxu0 0
      %2352 = vmatpush1.bf16.msra.mxu0 %v2330
      %2353 = vmatprep.subr.bf16.mxu0 0
      %2354 = vmatpush1.bf16.msra.mxu0 %v2329
      %2355 = vmatprep.subr.bf16.mxu0 0
      %2356 = vmatpush1.bf16.msra.mxu0 %v2328
      %2357 = vmatprep.subr.bf16.mxu0 0
      %2358 = vmatpush2.bf16.msra.mxu0 0
      %2359 = vmatprep.subr.bf16.mxu0 0
      %2360 = vmatpush2.bf16.msra.mxu0 0
      %2361 = vmatprep.subr.bf16.mxu0 0
      %2362 = vmatpush2.bf16.msra.mxu0 0
      %2363 = vmatprep.subr.bf16.mxu0 0
      %2364 = vmatpush2.bf16.msra.mxu0 0
      %2365 = vmatprep.subr.bf16.mxu0 0
      %2366 = vmatpush2.bf16.msra.mxu0 0
      %2367 = vmatprep.subr.bf16.mxu0 0
      %2368 = vmatpush2.bf16.msra.mxu0 0
      %2369 = vmatprep.subr.bf16.mxu0 0
      %2370 = vmatpush2.bf16.msra.mxu0 0
      %2371 = vmatprep.subr.bf16.mxu0 0
      %2372 = vmatpush2.bf16.msra.mxu0 0
      %2373 = vmatprep.mubr.bf16.mxu0 0
      %2374 = vmatmul.mubr.bf16.gmra.mxu0 %v2339
      %v2375 = vpop.f32.mrf.mxu0
      %v2376 = vadd.f32 0.0, %v2375
      %v2377 = vpop.f32.mrf.mxu0
      %v2378 = vpop.f32.mrf.mxu0
      %v2379 = vpop.f32.mrf.mxu0
      %2380 = vdwg.mxu0
      %v2381 = vadd.f32 %v2294, %v2376
      %v2382 = vld [vmem:[#allocation3 + $0x4] sm:$0x1]
      %v2383 = vpack.c.bf16 %v2382, %v2382
      %s2384 = scalar_lea.vmem %s9, 160
      %v2385 = vld [vmem:[%s2384] sm:$0xf]
      %v2386 = vld [vmem:[%s2384 + $0x4] sm:$0xf]
      %v2387 = vld [vmem:[%s2384 + $0x8] sm:$0xf]
      %v2388 = vld [vmem:[%s2384 + $0xc] sm:$0xf]
      %v2389 = vld [vmem:[%s2384 + $0x10] sm:$0xf]
      %v2390 = vld [vmem:[%s2384 + $0x14] sm:$0xf]
      %v2391 = vld [vmem:[%s2384 + $0x18] sm:$0xf]
      %v2392 = vld [vmem:[%s2384 + $0x1c] sm:$0xf]
      %v2393 = vld [vmem:[%s2384 + $0x20] sm:$0xf]
      %v2394 = vld [vmem:[%s2384 + $0x24] sm:$0xf]
      %v2405 = vunpack.c.l.b16 %v2385
      %v2406 = vunpack.c.l.b16 %v2386
      %v2407 = vunpack.c.l.b16 %v2387
      %v2408 = vunpack.c.l.b16 %v2388
      %v2409 = vunpack.c.l.b16 %v2389
      %v2410 = vunpack.c.l.b16 %v2390
      %v2411 = vunpack.c.l.b16 %v2391
      %v2412 = vunpack.c.l.b16 %v2392
      %v2413 = vunpack.c.l.b16 %v2393
      %v2414 = vunpack.c.l.b16 %v2394
      %v2415 = vpack.c.b16 %v2406, %v2405
      %v2416 = vpack.c.b16 %v2408, %v2407
      %v2417 = vpack.c.b16 %v2410, %v2409
      %v2418 = vpack.c.b16 %v2412, %v2411
      %v2419 = vpack.c.b16 %v2414, %v2413
      %v2426 = vsel %vm2091, %v2383, 0
      %2428 = vmatprep.subr.bf16.mxu0 0
      %2429 = vmatpush1.bf16.msra.mxu0 0
      %2430 = vmatprep.subr.bf16.mxu0 0
      %2431 = vmatpush1.bf16.msra.mxu0 0
      %2432 = vmatprep.subr.bf16.mxu0 0
      %2433 = vmatpush1.bf16.msra.mxu0 0
      %2434 = vmatprep.subr.bf16.mxu0 0
      %2435 = vmatpush1.bf16.msra.mxu0 %v2419
      %2436 = vmatprep.subr.bf16.mxu0 0
      %2437 = vmatpush1.bf16.msra.mxu0 %v2418
      %2438 = vmatprep.subr.bf16.mxu0 0
      %2439 = vmatpush1.bf16.msra.mxu0 %v2417
      %2440 = vmatprep.subr.bf16.mxu0 0
      %2441 = vmatpush1.bf16.msra.mxu0 %v2416
      %2442 = vmatprep.subr.bf16.mxu0 0
      %2443 = vmatpush1.bf16.msra.mxu0 %v2415
      %2444 = vmatprep.subr.bf16.mxu0 0
      %2445 = vmatpush2.bf16.msra.mxu0 0
      %2446 = vmatprep.subr.bf16.mxu0 0
      %2447 = vmatpush2.bf16.msra.mxu0 0
      %2448 = vmatprep.subr.bf16.mxu0 0
      %2449 = vmatpush2.bf16.msra.mxu0 0
      %2450 = vmatprep.subr.bf16.mxu0 0
      %2451 = vmatpush2.bf16.msra.mxu0 0
      %2452 = vmatprep.subr.bf16.mxu0 0
      %2453 = vmatpush2.bf16.msra.mxu0 0
      %2454 = vmatprep.subr.bf16.mxu0 0
      %2455 = vmatpush2.bf16.msra.mxu0 0
      %2456 = vmatprep.subr.bf16.mxu0 0
      %2457 = vmatpush2.bf16.msra.mxu0 0
      %2458 = vmatprep.subr.bf16.mxu0 0
      %2459 = vmatpush2.bf16.msra.mxu0 0
      %2460 = vmatprep.mubr.bf16.mxu0 0
      %2461 = vmatmul.mubr.bf16.gmra.mxu0 %v2426
      %v2462 = vpop.f32.mrf.mxu0
      %v2463 = vadd.f32 0.0, %v2462
      %v2464 = vpop.f32.mrf.mxu0
      %v2465 = vpop.f32.mrf.mxu0
      %v2466 = vpop.f32.mrf.mxu0
      %2467 = vdwg.mxu0
      %v2468 = vadd.f32 %v2381, %v2463
      %v2469 = vld [vmem:[%s10] sm:$0x1]
      %v2470 = vadd.f32 %v2468, %v2469
      %v2471 = vtanh.pop %v2470
      %v2472 = vmul.f32 %v2471, 1.7159
      %v2473 = vpack.c.bf16 %v2472, %v2472
      %v2474 = vld [vmem:[%s11] sm:$0xf]
      %v2475 = vld [vmem:[%s11 + $0x4] sm:$0xf]
      %v2476 = vld [vmem:[%s11 + $0x8] sm:$0xf]
      %v2477 = vld [vmem:[%s11 + $0xc] sm:$0xf]
      %v2478 = vld [vmem:[%s11 + $0x10] sm:$0xf]
      %v2479 = vld [vmem:[%s11 + $0x14] sm:$0xf]
      %v2480 = vld [vmem:[%s11 + $0x18] sm:$0xf]
      %v2481 = vld [vmem:[%s11 + $0x1c] sm:$0xf]
      %v2482 = vld [vmem:[%s11 + $0x20] sm:$0xf]
      %v2483 = vld [vmem:[%s11 + $0x24] sm:$0xf]
      %v2484 = vld [vmem:[%s11 + $0x28] sm:$0xf]
      %v2485 = vld [vmem:[%s11 + $0x2c] sm:$0xf]
      %v2486 = vld [vmem:[%s11 + $0x30] sm:$0xf]
      %v2487 = vld [vmem:[%s11 + $0x34] sm:$0xf]
      %v2488 = vld [vmem:[%s11 + $0x38] sm:$0xf]
      %v2489 = vld [vmem:[%s12] sm:$0x1]
      %v2505 = vunpack.c.l.b16 %v2474
      %v2506 = vunpack.c.l.b16 %v2475
      %v2507 = vunpack.c.l.b16 %v2476
      %v2508 = vunpack.c.l.b16 %v2477
      %v2509 = vunpack.c.l.b16 %v2478
      %v2510 = vunpack.c.l.b16 %v2479
      %v2511 = vunpack.c.l.b16 %v2480
      %v2512 = vunpack.c.l.b16 %v2481
      %v2513 = vunpack.c.l.b16 %v2482
      %v2514 = vunpack.c.l.b16 %v2483
      %v2515 = vunpack.c.l.b16 %v2484
      %v2516 = vunpack.c.l.b16 %v2485
      %v2517 = vunpack.c.l.b16 %v2486
      %v2518 = vunpack.c.l.b16 %v2487
      %v2519 = vunpack.c.l.b16 %v2488
      %v2520 = vpack.c.b16 %v2506, %v2505
      %v2521 = vpack.c.b16 %v2508, %v2507
      %v2522 = vpack.c.b16 %v2510, %v2509
      %v2523 = vpack.c.b16 %v2512, %v2511
      %v2524 = vpack.c.b16 %v2514, %v2513
      %v2525 = vpack.c.b16 %v2516, %v2515
      %v2526 = vpack.c.b16 %v2518, %v2517
      %v2527 = vpack.c.b16 %v2519, %v2519
      %vm2535 = vcmask 982016
      %v2537 = vsel %vm2535, %v2473, 0
      %v2540 = vsel %vm1159, %v2527, 0
      %2542 = vmatprep.subr.bf16.mxu0 0
      %2543 = vmatpush1.bf16.msra.mxu0 %v2540
      %2544 = vmatprep.subr.bf16.mxu0 0
      %2545 = vmatpush1.bf16.msra.mxu0 %v2526
      %2546 = vmatprep.subr.bf16.mxu0 0
      %2547 = vmatpush1.bf16.msra.mxu0 %v2525
      %2548 = vmatprep.subr.bf16.mxu0 0
      %2549 = vmatpush1.bf16.msra.mxu0 %v2524
      %2550 = vmatprep.subr.bf16.mxu0 0
      %2551 = vmatpush1.bf16.msra.mxu0 %v2523
      %2552 = vmatprep.subr.bf16.mxu0 0
      %2553 = vmatpush1.bf16.msra.mxu0 %v2522
      %2554 = vmatprep.subr.bf16.mxu0 0
      %2555 = vmatpush1.bf16.msra.mxu0 %v2521
      %2556 = vmatprep.subr.bf16.mxu0 0
      %2557 = vmatpush1.bf16.msra.mxu0 %v2520
      %2558 = vmatprep.subr.bf16.mxu0 0
      %2559 = vmatpush2.bf16.msra.mxu0 0
      %2560 = vmatprep.subr.bf16.mxu0 0
      %2561 = vmatpush2.bf16.msra.mxu0 0
      %2562 = vmatprep.subr.bf16.mxu0 0
      %2563 = vmatpush2.bf16.msra.mxu0 0
      %2564 = vmatprep.subr.bf16.mxu0 0
      %2565 = vmatpush2.bf16.msra.mxu0 0
      %2566 = vmatprep.subr.bf16.mxu0 0
      %2567 = vmatpush2.bf16.msra.mxu0 0
      %2568 = vmatprep.subr.bf16.mxu0 0
      %2569 = vmatpush2.bf16.msra.mxu0 0
      %2570 = vmatprep.subr.bf16.mxu0 0
      %2571 = vmatpush2.bf16.msra.mxu0 0
      %2572 = vmatprep.subr.bf16.mxu0 0
      %2573 = vmatpush2.bf16.msra.mxu0 0
      %2574 = vmatprep.mubr.bf16.mxu0 0
      %2575 = vmatmul.mubr.bf16.gmra.mxu0 %v2537
      %v2576 = vpop.f32.mrf.mxu0
      %v2577 = vadd.f32 %v2489, %v2576
      %v2578 = vpop.f32.mrf.mxu0
      %v2579 = vpop.f32.mrf.mxu0
      %v2580 = vpop.f32.mrf.mxu0
      %2581 = vdwg.mxu0
      %v2582 = vtanh.pop %v2577
      %v2583 = vmul.f32 %v2582, 1.7159
      %v2584 = vpack.c.bf16 %v2583, %v2583
      %v2585 = vld [vmem:[%s13] sm:$0xf]
      %v2586 = vld [vmem:[%s13 + $0x4] sm:$0xf]
      %v2587 = vld [vmem:[%s13 + $0x8] sm:$0xf]
      %v2588 = vld [vmem:[%s13 + $0xc] sm:$0xf]
      %v2589 = vld [vmem:[%s13 + $0x10] sm:$0xf]
      %v2590 = vld [vmem:[%s13 + $0x14] sm:$0xf]
      %v2591 = vld [vmem:[%s13 + $0x18] sm:$0xf]
      %v2592 = vld [vmem:[%s13 + $0x1c] sm:$0xf]
      %v2593 = vld [vmem:[%s13 + $0x20] sm:$0xf]
      %v2594 = vld [vmem:[%s13 + $0x24] sm:$0xf]
      %v2595 = vld [vmem:[%s13 + $0x28] sm:$0x3]
      %v2607 = vunpack.c.l.b16 %v2585
      %v2608 = vunpack.c.l.b16 %v2586
      %v2609 = vunpack.c.l.b16 %v2587
      %v2610 = vunpack.c.l.b16 %v2588
      %v2611 = vunpack.c.l.b16 %v2589
      %v2612 = vunpack.c.l.b16 %v2590
      %v2613 = vunpack.c.l.b16 %v2591
      %v2614 = vunpack.c.l.b16 %v2592
      %v2615 = vunpack.c.l.b16 %v2593
      %v2616 = vunpack.c.l.b16 %v2594
      %v2617 = vunpack.c.l.b16 %v2595
      %v2618 = vpack.c.b16 %v2608, %v2607
      %v2619 = vpack.c.b16 %v2610, %v2609
      %v2620 = vpack.c.b16 %v2612, %v2611
      %v2621 = vpack.c.b16 %v2614, %v2613
      %v2622 = vpack.c.b16 %v2616, %v2615
      %v2623 = vpack.c.b16 %v2617, %v2617
      %v2630 = vsel %vm1204, %v2584, 0
      %v2633 = vsel %vm1295, %v2623, 0
      %2635 = vmatprep.subr.bf16.mxu0 0
      %2636 = vmatpush1.bf16.msra.mxu0 0
      %2637 = vmatprep.subr.bf16.mxu0 0
      %2638 = vmatpush1.bf16.msra.mxu0 0
      %2639 = vmatprep.subr.bf16.mxu0 0
      %2640 = vmatpush1.bf16.msra.mxu0 %v2633
      %2641 = vmatprep.subr.bf16.mxu0 0
      %2642 = vmatpush1.bf16.msra.mxu0 %v2622
      %2643 = vmatprep.subr.bf16.mxu0 0
      %2644 = vmatpush1.bf16.msra.mxu0 %v2621
      %2645 = vmatprep.subr.bf16.mxu0 0
      %2646 = vmatpush1.bf16.msra.mxu0 %v2620
      %2647 = vmatprep.subr.bf16.mxu0 0
      %2648 = vmatpush1.bf16.msra.mxu0 %v2619
      %2649 = vmatprep.subr.bf16.mxu0 0
      %2650 = vmatpush1.bf16.msra.mxu0 %v2618
      %2651 = vmatprep.subr.bf16.mxu0 0
      %2652 = vmatpush2.bf16.msra.mxu0 0
      %2653 = vmatprep.subr.bf16.mxu0 0
      %2654 = vmatpush2.bf16.msra.mxu0 0
      %2655 = vmatprep.subr.bf16.mxu0 0
      %2656 = vmatpush2.bf16.msra.mxu0 0
      %2657 = vmatprep.subr.bf16.mxu0 0
      %2658 = vmatpush2.bf16.msra.mxu0 0
      %2659 = vmatprep.subr.bf16.mxu0 0
      %2660 = vmatpush2.bf16.msra.mxu0 0
      %2661 = vmatprep.subr.bf16.mxu0 0
      %2662 = vmatpush2.bf16.msra.mxu0 0
      %2663 = vmatprep.subr.bf16.mxu0 0
      %2664 = vmatpush2.bf16.msra.mxu0 0
      %2665 = vmatprep.subr.bf16.mxu0 0
      %2666 = vmatpush2.bf16.msra.mxu0 0
      %2667 = vmatprep.mubr.bf16.mxu0 0
      %2668 = vmatmul.mubr.bf16.gmra.mxu0 %v2630
      %v2669 = vpop.f32.mrf.mxu0
      %v2670 = vadd.f32 0.0, %v2669
      %v2671 = vpop.f32.mrf.mxu0
      %v2672 = vpop.f32.mrf.mxu0
      %v2673 = vpop.f32.mrf.mxu0
      %2674 = vdwg.mxu0
      %v2675 = vmul.f32 %v2583, %v2583
      %vm2676 = vcmask 679936
      %v2677 = vsel %vm2676, %v2675, 0.0
      %2678 = vadd.xlane.f32.xlu0 %v2677
      %v2679 = vpop.xlane.xlu0 %2678
      %v2680 = vld [vmem:[%s14] sm:$0x1]
      %v2681 = vadd.f32 %v2679, %v2680
      %v2682 = vmul.f32 %v2670, 2.0
      %v2683 = vsub.f32 %v2681, %v2682
      %v2684 = vlaneseq
      %v2685 = vshrl.u32 %v2684, 7
      %v2686 = vsub.s32 0, %v2685
      %v2687 = vrot.slane %v2683, %v2686
      %2688 = vst [vmem:[%s492] sm:$0xff] %v2687
      %p2689 = scmp.lt.s32.totalorder %s26, 1
      %s2690 = scalar_select %p2689, %s26, 1
      %s2691 = smul.addr %s2690, 8
      %s2692 = scalar_lea.vmem %s15, %s2691
      // Predicated region
      $region81: #{lenet5_forward.1} parent=79 // pred_check
        %p2693 = pneg %p364
      $region82: #{lenet5_forward.1} parent=79 // pred_check_branch
        %2695 = sbr.rel (%p2693) target = $region84
      $region83: #{lenet5_forward.1} parent=79 // pred_region
        _
      $region84: #{lenet5_forward.1} parent=79 // pred_fallthru
        _
    $region80: #{lenet5_forward.1} parent=5 // pred_fallthru
      _
    %p2696 = scmp.le.s32.totalorder 2, %s21
    // Predicated region
    $region85: #{lenet5_forward.1} parent=5 // pred_check
      %p2697 = pneg %p2696
    $region86: #{lenet5_forward.1} parent=5 // pred_check_branch
      %2699 = sbr.rel (%p2697) target = $region88
    $region87: #{lenet5_forward.1} parent=5 // pred_region
      %s2700 = ssub.s32 %s21, 2
      // Predicated region
      $region89: #{lenet5_forward.1} parent=87 // pred_check
        %p2701 = pneg %p370
      $region90: #{lenet5_forward.1} parent=87 // pred_check_branch
        %2703 = sbr.rel (%p2701) target = $region92
      $region91: #{lenet5_forward.1} parent=87 // pred_region
        %p2704 = scmp.lt.s32.totalorder %s27, 1
        %s2705 = scalar_select %p2704, %s27, 1
        %s2706 = smul.addr %s2705, 8
        %s2707 = scalar_lea.vmem %s15, %s2706
      $region92: #{lenet5_forward.1} parent=87 // pred_fallthru
        _
    $region88: #{lenet5_forward.1} parent=5 // pred_fallthru
      _
  $region6: #{lenet5_forward.1} parent=0 // loop_footer
    %s25 = sadd.s32 1, %s21
  $region7: #{lenet5_forward.1} parent=0 // loop_footer_branch
    %20 = sbr.rel target = $region3
  $region8: #{lenet5_forward.1} parent=0 // loop_exit
    _

</llo_original>
